<compile_context>
chip_gen: v7x
topology: tpu7x:2x2x1
jax: 0.10.0
libtpu: 0.0.40
codegen_flags: <defaults>
</compile_context>

<pallas_src>
import jax
import jax.numpy as jnp
from jax import lax
from jax.experimental import pallas as pl
from jax.experimental.pallas import tpu as pltpu


CHUNK = 256   # state-reset period, matches the PyTorch chunked scan


# ----------------------------- math helpers ------------------------------- #
def _sigmoid(x):
    return 1.0 / (1.0 + jnp.exp(-x))


def _silu(x):
    return x * _sigmoid(x)


def _softplus(x):
    # matches torch.nn.functional.softplus (threshold = 20)
    return jnp.where(x > 20.0, x, jnp.log1p(jnp.exp(jnp.minimum(x, 20.0))))


# ------------------------------ Pallas kernel ------------------------------ #
def _mamba_kernel(x_ref, w_in_ref, b_in_ref, conv_w_ref, conv_b_ref,
                  w_xp_ref, w_dt_ref, b_dt_ref, a_logT_ref,
                  w_out_ref, b_out_ref,
                  out_ref,
                  xpad_ref, delta_ref, du_ref, y_ref):
    f32 = jnp.float32
    L = x_ref.shape[1]
    n_state, d_inner = a_logT_ref.shape
    dt_rank = w_dt_ref.shape[0]
    K = conv_w_ref.shape[0]

    x = x_ref[0]                                                     # (L, d_model)

    # --- in_proj: single fused matmul, split along lanes ---
    xr = jnp.dot(x, w_in_ref[...], preferred_element_type=f32) + b_in_ref[...]
    xc = xr[:, :d_inner]                                             # (L, d_inner)
    res = xr[:, d_inner:]                                            # (L, d_inner)

    # --- depthwise causal conv1d (pad = K-1, truncate to L) via shifted
    #     static slices of a zero-padded VMEM buffer (no MXU, no (L,L) masks) ---
    xpad_ref[pl.ds(0, K - 1), :] = jnp.zeros((K - 1, d_inner), f32)
    xpad_ref[pl.ds(K - 1, L), :] = xc
    acc = xpad_ref[pl.ds(0, L), :] * conv_w_ref[0:1, :]
    for j in range(1, K):                                            # static unroll
        acc = acc + xpad_ref[pl.ds(j, L), :] * conv_w_ref[j:j + 1, :]
    u = _silu(acc + conv_b_ref[...])                                 # (L, d_inner)

    # --- x_proj: single fused matmul -> (delta_low | B | C), then dt_proj ---
    xproj = jnp.dot(u, w_xp_ref[...], preferred_element_type=f32)    # (L, R+2N)
    delta_low = xproj[:, :dt_rank]                                   # (L, R)
    b_mat = xproj[:, dt_rank:dt_rank + n_state]                      # (L, N)
    c_mat = xproj[:, dt_rank + n_state:]                             # (L, N)
    delta = _softplus(
        jnp.dot(delta_low, w_dt_ref[...], preferred_element_type=f32)
        + b_dt_ref[...])                                             # (L, d_inner)

    # per-timestep rows are read back from VMEM scratch inside the scan
    delta_ref[...] = delta
    du_ref[...] = delta * u
    a_t = -jnp.exp(a_logT_ref[...])                                  # (N, D)

    # --- sequential selective scan, chunked at the 256-step reset boundary.
    #     state layout: (n_state, d_inner)  -> d_inner on lanes.
    #     deltaA / deltaB_u are recomputed per step (EUP exp + VPU FMA).
    num_chunks = (L + CHUNK - 1) // CHUNK                            # static
    for ci in range(num_chunks):                                     # static unroll
        start = ci * CHUNK
        clen = min(CHUNK, L - start)
        # small one-time per-chunk transposes so B[t]/C[t] can be gathered as
        # (N, 1) columns with pure elementwise + lane-reduce ops.
        bT = jnp.transpose(b_mat[start:start + clen, :])             # (N, clen)
        cT = jnp.transpose(c_mat[start:start + clen, :])             # (N, clen)
        lane_ids = lax.broadcasted_iota(jnp.int32, (1, clen), 1)     # (1, clen)

        def body(i, state, start=start, bT=bT, cT=cT, lane_ids=lane_ids):
            onehot = (lane_ids == i).astype(f32)                     # (1, clen)
            b_col = jnp.sum(bT * onehot, axis=1, keepdims=True)      # (N, 1)
            c_col = jnp.sum(cT * onehot, axis=1, keepdims=True)      # (N, 1)
            d_row = delta_ref[pl.ds(start + i, 1), :]                # (1, D)
            du_row = du_ref[pl.ds(start + i, 1), :]                  # (1, D)
            dA_t = jnp.exp(d_row * a_t)                              # (N, D)
            state = dA_t * state + b_col * du_row                    # (N, D)
            y_ref[pl.ds(start + i, 1), :] = jnp.sum(
                state * c_col, axis=0, keepdims=True)                # (1, D) row
            return state

        state0 = jnp.zeros((n_state, d_inner), f32)                  # reset / chunk
        lax.fori_loop(0, clen, body, state0,
                      unroll=True if clen <= 16 else 8)

    # --- gate + out_proj ---
    y = y_ref[...] * _silu(res)                                      # (L, D)
    out = jnp.dot(y, w_out_ref[...], preferred_element_type=f32) + b_out_ref[...]
    out_ref[0] = out.astype(out_ref.dtype)


# ------------------------------- wrapper ----------------------------------- #
def parallel_mamba_pallas(x, params):
    B, L, d_model = x.shape
    d_inner, n_state = params["A_log"].shape
    K = params["conv_w"].shape[0]

    operands = (
        x,
        params["w_in"], params["b_in"].reshape(1, -1),
        params["conv_w"], params["conv_b"].reshape(1, -1),
        params["w_xp"],
        params["w_dt"], params["b_dt"].reshape(1, -1),
        jnp.transpose(params["A_log"]),            # (n_state, d_inner)
        params["w_out"], params["b_out"].reshape(1, -1),
    )

    def full_spec(a):
        return pl.BlockSpec(a.shape, lambda b, _nd=a.ndim: (0,) * _nd)

    in_specs = [pl.BlockSpec((1, L, d_model), lambda b: (b, 0, 0))]
    in_specs += [full_spec(a) for a in operands[1:]]

    return pl.pallas_call(
        _mamba_kernel,
        out_shape=jax.ShapeDtypeStruct((B, L, d_model), jnp.float32),
        grid=(B,),
        in_specs=in_specs,
        out_specs=pl.BlockSpec((1, L, d_model), lambda b: (b, 0, 0)),
        scratch_shapes=[
            pltpu.VMEM((L + K - 1, d_inner), jnp.float32),  # causal-padded conv in
            pltpu.VMEM((L, d_inner), jnp.float32),          # delta
            pltpu.VMEM((L, d_inner), jnp.float32),          # delta * u
            pltpu.VMEM((L, d_inner), jnp.float32),          # scan output y
        ],
        compiler_params=pltpu.CompilerParams(
            dimension_semantics=("parallel",)),
    )(*operands)


parallel_mamba_pallas = jax.jit(parallel_mamba_pallas)


# --------------------------- pure-JAX reference ----------------------------- #
def parallel_mamba_ref(x, params):
    B, L, d_model = x.shape
    d_inner, n_state = params["A_log"].shape
    dt_rank = params["w_dt"].shape[0]
    K = params["conv_w"].shape[0]

    xr = x @ params["w_in"] + params["b_in"]
    xc, res = xr[..., :d_inner], xr[..., d_inner:]

    x_pad = jnp.pad(xc, ((0, 0), (K - 1, 0), (0, 0)))
    conv = sum(params["conv_w"][j][None, None, :] * x_pad[:, j:j + L, :]
               for j in range(K)) + params["conv_b"]
    u = _silu(conv)

    proj = u @ params["w_xp"]
    delta_low = proj[..., :dt_rank]
    Bm = proj[..., dt_rank:dt_rank + n_state]
    Cm = proj[..., dt_rank + n_state:]
    delta = _softplus(delta_low @ params["w_dt"] + params["b_dt"])
    A = -jnp.exp(params["A_log"])

    dA = jnp.exp(jnp.einsum("bld,dn->bldn", delta, A))
    dBu = jnp.einsum("bld,bln,bld->bldn", delta, Bm, u)

    state = jnp.zeros((B, d_inner, n_state), jnp.float32)
    ys = []
    for t in range(L):
        if t % CHUNK == 0:
            state = jnp.zeros_like(state)
        state = dA[:, t] * state + dBu[:, t]
        ys.append(jnp.einsum("bdn,bn->bd", state, Cm[:, t]))
    y = jnp.stack(ys, axis=1)
    y = y * _silu(res)
    return y @ params["w_out"] + params["b_out"]


# ------------------------------- params init -------------------------------- #
def make_params(key, d_model, d_inner, n_state, dt_rank, kernel_size):
    ks = jax.random.split(key, 12)

    def uni(k, shape, fan_in):
        bound = 1.0 / float(fan_in) ** 0.5
        return jax.random.uniform(k, shape, jnp.float32, -bound, bound)

    return dict(
        A_log=jax.random.normal(ks[0], (d_inner, n_state), jnp.float32),
        # D is declared in the PyTorch module but never used in forward().
        D=jax.random.normal(ks[1], (d_inner,), jnp.float32),
        w_in=uni(ks[2], (d_model, 2 * d_inner), d_model),
        b_in=uni(ks[3], (2 * d_inner,), d_model),
        conv_w=uni(ks[4], (kernel_size, d_inner), kernel_size),   # depthwise taps
        conv_b=uni(ks[5], (d_inner,), kernel_size),
        w_xp=uni(ks[6], (d_inner, dt_rank + 2 * n_state), d_inner),
        w_dt=uni(ks[7], (dt_rank, d_inner), dt_rank),
        b_dt=uni(ks[8], (d_inner,), dt_rank),
        w_out=uni(ks[9], (d_inner, d_model), d_inner),
        b_out=uni(ks[10], (d_model,), d_inner),
    )


# ---------------------------------- main ------------------------------------ #
if __name__ == "__main__":
    d_model, d_inner, n_state, dt_rank, kernel_size = 32, 64, 16, 8, 3
    batch, seq_len = 2, 8

    key = jax.random.PRNGKey(0)
    kp, kx = jax.random.split(key)
    params = make_params(kp, d_model, d_inner, n_state, dt_rank, kernel_size)
    x = jax.random.normal(kx, (batch, seq_len, d_model), jnp.float32)

    out = parallel_mamba_pallas(x, params)
    out = jax.block_until_ready(out)

    ref = parallel_mamba_ref(x, params)
    assert out.shape == (batch, seq_len, d_model)
    assert jnp.allclose(out, ref, atol=1e-2, rtol=1e-2), (
        f"max abs err {float(jnp.max(jnp.abs(out - ref)))}")

    print("KERNEL_OK")
</pallas_src>

<mosaic_0001>
module attributes {stable_mosaic.version = 11 : i64} {
  func.func @_mamba_kernel(%arg0: i32, %arg1: memref<1x8x32xf32, #tpu.memory_space<vmem>>, %arg2: memref<32x128xf32, #tpu.memory_space<vmem>>, %arg3: memref<1x128xf32, #tpu.memory_space<vmem>>, %arg4: memref<3x64xf32, #tpu.memory_space<vmem>>, %arg5: memref<1x64xf32, #tpu.memory_space<vmem>>, %arg6: memref<64x40xf32, #tpu.memory_space<vmem>>, %arg7: memref<8x64xf32, #tpu.memory_space<vmem>>, %arg8: memref<1x64xf32, #tpu.memory_space<vmem>>, %arg9: memref<16x64xf32, #tpu.memory_space<vmem>>, %arg10: memref<64x32xf32, #tpu.memory_space<vmem>>, %arg11: memref<1x32xf32, #tpu.memory_space<vmem>>, %arg12: memref<1x8x32xf32, #tpu.memory_space<vmem>>, %arg13: memref<10x64xf32, #tpu.memory_space<vmem>>, %arg14: memref<8x64xf32, #tpu.memory_space<vmem>>, %arg15: memref<8x64xf32, #tpu.memory_space<vmem>>, %arg16: memref<8x64xf32, #tpu.memory_space<vmem>>) attributes {dimension_semantics = [#tpu.dimension_semantics<parallel>], iteration_bounds = array<i64: 2>, scalar_prefetch = 0 : i64, scratch_operands = 4 : i64, tpu.core_type = #tpu.core_type<tc>, window_params = [{transform_indices = @transform_0, window_bounds = array<i64: 1, 8, 32>}, {pipeline_mode = #tpu.pipeline_mode<synchronous>, transform_indices = @transform_1, window_bounds = array<i64: 32, 128>}, {pipeline_mode = #tpu.pipeline_mode<synchronous>, transform_indices = @transform_2, window_bounds = array<i64: 1, 128>}, {pipeline_mode = #tpu.pipeline_mode<synchronous>, transform_indices = @transform_3, window_bounds = array<i64: 3, 64>}, {pipeline_mode = #tpu.pipeline_mode<synchronous>, transform_indices = @transform_4, window_bounds = array<i64: 1, 64>}, {pipeline_mode = #tpu.pipeline_mode<synchronous>, transform_indices = @transform_5, window_bounds = array<i64: 64, 40>}, {pipeline_mode = #tpu.pipeline_mode<synchronous>, transform_indices = @transform_6, window_bounds = array<i64: 8, 64>}, {pipeline_mode = #tpu.pipeline_mode<synchronous>, transform_indices = @transform_7, window_bounds = array<i64: 1, 64>}, {pipeline_mode = #tpu.pipeline_mode<synchronous>, transform_indices = @transform_8, window_bounds = array<i64: 16, 64>}, {pipeline_mode = #tpu.pipeline_mode<synchronous>, transform_indices = @transform_9, window_bounds = array<i64: 64, 32>}, {pipeline_mode = #tpu.pipeline_mode<synchronous>, transform_indices = @transform_10, window_bounds = array<i64: 1, 32>}, {transform_indices = @transform_11, window_bounds = array<i64: 1, 8, 32>}]} {
    %c0 = arith.constant 0 : index
    %c0_0 = arith.constant 0 : index
    %c0_1 = arith.constant 0 : index
    %0 = vector.load %arg1[%c0, %c0_0, %c0_1] : memref<1x8x32xf32, #tpu.memory_space<vmem>>, vector<1x8x32xf32>
    %1 = vector.shape_cast %0 : vector<1x8x32xf32> to vector<8x32xf32>
    %c0_2 = arith.constant 0 : index
    %c0_3 = arith.constant 0 : index
    %2 = vector.load %arg2[%c0_2, %c0_3] : memref<32x128xf32, #tpu.memory_space<vmem>>, vector<32x128xf32>
    %cst = arith.constant dense<0.000000e+00> : vector<8x128xf32>
    %3 = tpu.matmul %1, %2, %cst {dimension_numbers = #tpu.dot_dimension_numbers<[1], [0], [0], [1], [0, 0, 1, 1], [], []>} : vector<8x32xf32>, vector<32x128xf32>, vector<8x128xf32> -> vector<8x128xf32>
    %c0_4 = arith.constant 0 : index
    %c0_5 = arith.constant 0 : index
    %4 = vector.load %arg3[%c0_4, %c0_5] : memref<1x128xf32, #tpu.memory_space<vmem>>, vector<1x128xf32>
    %5 = vector.broadcast %4 : vector<1x128xf32> to vector<8x128xf32>
    %6 = arith.addf %3, %5 : vector<8x128xf32>
    %7 = vector.extract_strided_slice %6 {offsets = [0, 0], sizes = [8, 64], strides = [1, 1]} : vector<8x128xf32> to vector<8x64xf32>
    %8 = vector.extract_strided_slice %6 {offsets = [0, 64], sizes = [8, 64], strides = [1, 1]} : vector<8x128xf32> to vector<8x64xf32>
    %cst_6 = arith.constant 0.000000e+00 : f32
    %9 = vector.broadcast %cst_6 : f32 to vector<2x64xf32>
    %c0_7 = arith.constant 0 : index
    %c0_8 = arith.constant 0 : index
    %10 = vector.load %arg13[%c0_7, %c0_8] : memref<10x64xf32, #tpu.memory_space<vmem>>, vector<2x64xf32>
    tpu.vector_store %arg13[%c0_7, %c0_8], %9 {strides = array<i32>} : memref<10x64xf32, #tpu.memory_space<vmem>>, vector<2x64xf32>,
    %c2 = arith.constant 2 : index
    %c0_9 = arith.constant 0 : index
    %11 = vector.load %arg13[%c2, %c0_9] : memref<10x64xf32, #tpu.memory_space<vmem>>, vector<8x64xf32>
    tpu.vector_store %arg13[%c2, %c0_9], %7 {strides = array<i32>} : memref<10x64xf32, #tpu.memory_space<vmem>>, vector<8x64xf32>,
    %c0_10 = arith.constant 0 : index
    %c0_11 = arith.constant 0 : index
    %12 = vector.load %arg13[%c0_10, %c0_11] : memref<10x64xf32, #tpu.memory_space<vmem>>, vector<8x64xf32>
    %c0_12 = arith.constant 0 : index
    %c0_13 = arith.constant 0 : index
    %13 = vector.load %arg4[%c0_12, %c0_13] : memref<3x64xf32, #tpu.memory_space<vmem>>, vector<1x64xf32>
    %14 = vector.broadcast %13 : vector<1x64xf32> to vector<8x64xf32>
    %15 = arith.mulf %12, %14 : vector<8x64xf32>
    %c1 = arith.constant 1 : index
    %c0_14 = arith.constant 0 : index
    %16 = vector.load %arg13[%c1, %c0_14] : memref<10x64xf32, #tpu.memory_space<vmem>>, vector<8x64xf32>
    %c1_15 = arith.constant 1 : index
    %c0_16 = arith.constant 0 : index
    %17 = vector.load %arg4[%c1_15, %c0_16] : memref<3x64xf32, #tpu.memory_space<vmem>>, vector<1x64xf32>
    %18 = vector.broadcast %17 : vector<1x64xf32> to vector<8x64xf32>
    %19 = arith.mulf %16, %18 : vector<8x64xf32>
    %20 = arith.addf %15, %19 : vector<8x64xf32>
    %c2_17 = arith.constant 2 : index
    %c0_18 = arith.constant 0 : index
    %21 = vector.load %arg13[%c2_17, %c0_18] : memref<10x64xf32, #tpu.memory_space<vmem>>, vector<8x64xf32>
    %c2_19 = arith.constant 2 : index
    %c0_20 = arith.constant 0 : index
    %22 = vector.load %arg4[%c2_19, %c0_20] : memref<3x64xf32, #tpu.memory_space<vmem>>, vector<1x64xf32>
    %23 = vector.broadcast %22 : vector<1x64xf32> to vector<8x64xf32>
    %24 = arith.mulf %21, %23 : vector<8x64xf32>
    %25 = arith.addf %20, %24 : vector<8x64xf32>
    %c0_21 = arith.constant 0 : index
    %c0_22 = arith.constant 0 : index
    %26 = vector.load %arg5[%c0_21, %c0_22] : memref<1x64xf32, #tpu.memory_space<vmem>>, vector<1x64xf32>
    %27 = vector.broadcast %26 : vector<1x64xf32> to vector<8x64xf32>
    %28 = arith.addf %25, %27 : vector<8x64xf32>
    %cst_23 = arith.constant 0.000000e+00 : f32
    %29 = vector.broadcast %cst_23 : f32 to vector<8x64xf32>
    %30 = arith.subf %29, %28 : vector<8x64xf32>
    %31 = math.exp %30 : vector<8x64xf32>
    %cst_24 = arith.constant 1.000000e+00 : f32
    %32 = vector.broadcast %cst_24 : f32 to vector<8x64xf32>
    %33 = arith.addf %32, %31 : vector<8x64xf32>
    %cst_25 = arith.constant 1.000000e+00 : f32
    %34 = vector.broadcast %cst_25 : f32 to vector<8x64xf32>
    %35 = arith.divf %34, %33 : vector<8x64xf32>
    %36 = arith.mulf %28, %35 : vector<8x64xf32>
    %c0_26 = arith.constant 0 : index
    %c0_27 = arith.constant 0 : index
    %37 = vector.load %arg6[%c0_26, %c0_27] : memref<64x40xf32, #tpu.memory_space<vmem>>, vector<64x40xf32>
    %cst_28 = arith.constant dense<0.000000e+00> : vector<8x40xf32>
    %38 = tpu.matmul %36, %37, %cst_28 {dimension_numbers = #tpu.dot_dimension_numbers<[1], [0], [0], [1], [0, 0, 1, 1], [], []>} : vector<8x64xf32>, vector<64x40xf32>, vector<8x40xf32> -> vector<8x40xf32>
    %39 = vector.extract_strided_slice %38 {offsets = [0, 0], sizes = [8, 8], strides = [1, 1]} : vector<8x40xf32> to vector<8x8xf32>
    %40 = vector.extract_strided_slice %38 {offsets = [0, 8], sizes = [8, 16], strides = [1, 1]} : vector<8x40xf32> to vector<8x16xf32>
    %41 = vector.extract_strided_slice %38 {offsets = [0, 24], sizes = [8, 16], strides = [1, 1]} : vector<8x40xf32> to vector<8x16xf32>
    %c0_29 = arith.constant 0 : index
    %c0_30 = arith.constant 0 : index
    %42 = vector.load %arg7[%c0_29, %c0_30] : memref<8x64xf32, #tpu.memory_space<vmem>>, vector<8x64xf32>
    %cst_31 = arith.constant dense<0.000000e+00> : vector<8x64xf32>
    %43 = tpu.matmul %39, %42, %cst_31 {dimension_numbers = #tpu.dot_dimension_numbers<[1], [0], [0], [1], [0, 0, 1, 1], [], []>} : vector<8x8xf32>, vector<8x64xf32>, vector<8x64xf32> -> vector<8x64xf32>
    %c0_32 = arith.constant 0 : index
    %c0_33 = arith.constant 0 : index
    %44 = vector.load %arg8[%c0_32, %c0_33] : memref<1x64xf32, #tpu.memory_space<vmem>>, vector<1x64xf32>
    %45 = vector.broadcast %44 : vector<1x64xf32> to vector<8x64xf32>
    %46 = arith.addf %43, %45 : vector<8x64xf32>
    %cst_34 = arith.constant 2.000000e+01 : f32
    %47 = vector.broadcast %cst_34 : f32 to vector<8x64xf32>
    %48 = arith.cmpf ogt, %46, %47 : vector<8x64xf32>
    %cst_35 = arith.constant 2.000000e+01 : f32
    %49 = vector.broadcast %cst_35 : f32 to vector<8x64xf32>
    %50 = arith.minimumf %46, %49 : vector<8x64xf32>
    %51 = math.exp %50 : vector<8x64xf32>
    %52 = math.log1p %51 : vector<8x64xf32>
    %53 = arith.select %48, %46, %52 : vector<8x64xi1>, vector<8x64xf32>
    %c0_36 = arith.constant 0 : index
    %c0_37 = arith.constant 0 : index
    %54 = vector.load %arg14[%c0_36, %c0_37] : memref<8x64xf32, #tpu.memory_space<vmem>>, vector<8x64xf32>
    tpu.vector_store %arg14[%c0_36, %c0_37], %53 {strides = array<i32>} : memref<8x64xf32, #tpu.memory_space<vmem>>, vector<8x64xf32>,
    %55 = arith.mulf %53, %36 : vector<8x64xf32>
    %c0_38 = arith.constant 0 : index
    %c0_39 = arith.constant 0 : index
    %56 = vector.load %arg15[%c0_38, %c0_39] : memref<8x64xf32, #tpu.memory_space<vmem>>, vector<8x64xf32>
    tpu.vector_store %arg15[%c0_38, %c0_39], %55 {strides = array<i32>} : memref<8x64xf32, #tpu.memory_space<vmem>>, vector<8x64xf32>,
    %c0_40 = arith.constant 0 : index
    %c0_41 = arith.constant 0 : index
    %57 = vector.load %arg9[%c0_40, %c0_41] : memref<16x64xf32, #tpu.memory_space<vmem>>, vector<16x64xf32>
    %58 = math.exp %57 : vector<16x64xf32>
    %cst_42 = arith.constant 0.000000e+00 : f32
    %59 = vector.broadcast %cst_42 : f32 to vector<16x64xf32>
    %60 = arith.subf %59, %58 : vector<16x64xf32>
    %61 = tpu.transpose %40, [1, 0] : vector<8x16xf32> -> vector<16x8xf32>
    %62 = tpu.transpose %41, [1, 0] : vector<8x16xf32> -> vector<16x8xf32>
    %63 = tpu.iota {dimensions = array<i32: 1>} : vector<1x8xi32>
    %cst_43 = arith.constant 0.000000e+00 : f32
    %64 = vector.broadcast %cst_43 : f32 to vector<16x64xf32>
    %c0_i32 = arith.constant 0 : i32
    %65 = vector.broadcast %c0_i32 : i32 to vector<1x8xi32>
    %66 = arith.cmpi eq, %63, %65 : vector<1x8xi32>
    %67 = arith.extui %66 : vector<1x8xi1> to vector<1x8xi32>
    %68 = arith.sitofp %67 : vector<1x8xi32> to vector<1x8xf32>
    %69 = vector.broadcast %68 : vector<1x8xf32> to vector<16x8xf32>
    %70 = arith.mulf %61, %69 : vector<16x8xf32>
    %cst_44 = arith.constant dense<0.000000e+00> : vector<16xf32>
    %71 = vector.multi_reduction <add>, %70, %cst_44 [1] : vector<16x8xf32> to vector<16xf32>
    %72 = vector.shape_cast %71 : vector<16xf32> to vector<16x1xf32>
    %73 = vector.broadcast %68 : vector<1x8xf32> to vector<16x8xf32>
    %74 = arith.mulf %62, %73 : vector<16x8xf32>
    %cst_45 = arith.constant dense<0.000000e+00> : vector<16xf32>
    %75 = vector.multi_reduction <add>, %74, %cst_45 [1] : vector<16x8xf32> to vector<16xf32>
    %76 = vector.shape_cast %75 : vector<16xf32> to vector<16x1xf32>
    %c0_i32_46 = arith.constant 0 : i32
    %77 = arith.addi %c0_i32_46, %c0_i32 : i32
    %78 = arith.index_cast %77 : i32 to index
    %c0_47 = arith.constant 0 : index
    %79 = vector.load %arg14[%78, %c0_47] : memref<8x64xf32, #tpu.memory_space<vmem>>, vector<1x64xf32>
    %c0_i32_48 = arith.constant 0 : i32
    %80 = arith.addi %c0_i32_48, %c0_i32 : i32
    %81 = arith.index_cast %80 : i32 to index
    %c0_49 = arith.constant 0 : index
    %82 = vector.load %arg15[%81, %c0_49] : memref<8x64xf32, #tpu.memory_space<vmem>>, vector<1x64xf32>
    %83 = vector.broadcast %79 : vector<1x64xf32> to vector<16x64xf32>
    %84 = arith.mulf %83, %60 : vector<16x64xf32>
    %85 = math.exp %84 : vector<16x64xf32>
    %86 = arith.mulf %85, %64 : vector<16x64xf32>
    %87 = vector.broadcast %72 : vector<16x1xf32> to vector<16x64xf32>
    %88 = vector.broadcast %82 : vector<1x64xf32> to vector<16x64xf32>
    %89 = arith.mulf %87, %88 : vector<16x64xf32>
    %90 = arith.addf %86, %89 : vector<16x64xf32>
    %91 = vector.broadcast %76 : vector<16x1xf32> to vector<16x64xf32>
    %92 = arith.mulf %90, %91 : vector<16x64xf32>
    %cst_50 = arith.constant dense<0.000000e+00> : vector<64xf32>
    %93 = vector.multi_reduction <add>, %92, %cst_50 [0] : vector<16x64xf32> to vector<64xf32>
    %94 = vector.shape_cast %93 : vector<64xf32> to vector<1x64xf32>
    %c0_i32_51 = arith.constant 0 : i32
    %95 = arith.addi %c0_i32_51, %c0_i32 : i32
    %96 = arith.index_cast %95 : i32 to index
    %c0_52 = arith.constant 0 : index
    %97 = vector.load %arg16[%96, %c0_52] : memref<8x64xf32, #tpu.memory_space<vmem>>, vector<1x64xf32>
    tpu.vector_store %arg16[%96, %c0_52], %94 {strides = array<i32>} : memref<8x64xf32, #tpu.memory_space<vmem>>, vector<1x64xf32>,
    %c1_i32 = arith.constant 1 : i32
    %98 = vector.broadcast %c1_i32 : i32 to vector<1x8xi32>
    %99 = arith.cmpi eq, %63, %98 : vector<1x8xi32>
    %100 = arith.extui %99 : vector<1x8xi1> to vector<1x8xi32>
    %101 = arith.sitofp %100 : vector<1x8xi32> to vector<1x8xf32>
    %102 = vector.broadcast %101 : vector<1x8xf32> to vector<16x8xf32>
    %103 = arith.mulf %61, %102 : vector<16x8xf32>
    %cst_53 = arith.constant dense<0.000000e+00> : vector<16xf32>
    %104 = vector.multi_reduction <add>, %103, %cst_53 [1] : vector<16x8xf32> to vector<16xf32>
    %105 = vector.shape_cast %104 : vector<16xf32> to vector<16x1xf32>
    %106 = vector.broadcast %101 : vector<1x8xf32> to vector<16x8xf32>
    %107 = arith.mulf %62, %106 : vector<16x8xf32>
    %cst_54 = arith.constant dense<0.000000e+00> : vector<16xf32>
    %108 = vector.multi_reduction <add>, %107, %cst_54 [1] : vector<16x8xf32> to vector<16xf32>
    %109 = vector.shape_cast %108 : vector<16xf32> to vector<16x1xf32>
    %c0_i32_55 = arith.constant 0 : i32
    %110 = arith.addi %c0_i32_55, %c1_i32 : i32
    %111 = arith.index_cast %110 : i32 to index
    %c0_56 = arith.constant 0 : index
    %112 = vector.load %arg14[%111, %c0_56] : memref<8x64xf32, #tpu.memory_space<vmem>>, vector<1x64xf32>
    %c0_i32_57 = arith.constant 0 : i32
    %113 = arith.addi %c0_i32_57, %c1_i32 : i32
    %114 = arith.index_cast %113 : i32 to index
    %c0_58 = arith.constant 0 : index
    %115 = vector.load %arg15[%114, %c0_58] : memref<8x64xf32, #tpu.memory_space<vmem>>, vector<1x64xf32>
    %116 = vector.broadcast %112 : vector<1x64xf32> to vector<16x64xf32>
    %117 = arith.mulf %116, %60 : vector<16x64xf32>
    %118 = math.exp %117 : vector<16x64xf32>
    %119 = arith.mulf %118, %90 : vector<16x64xf32>
    %120 = vector.broadcast %105 : vector<16x1xf32> to vector<16x64xf32>
    %121 = vector.broadcast %115 : vector<1x64xf32> to vector<16x64xf32>
    %122 = arith.mulf %120, %121 : vector<16x64xf32>
    %123 = arith.addf %119, %122 : vector<16x64xf32>
    %124 = vector.broadcast %109 : vector<16x1xf32> to vector<16x64xf32>
    %125 = arith.mulf %123, %124 : vector<16x64xf32>
    %cst_59 = arith.constant dense<0.000000e+00> : vector<64xf32>
    %126 = vector.multi_reduction <add>, %125, %cst_59 [0] : vector<16x64xf32> to vector<64xf32>
    %127 = vector.shape_cast %126 : vector<64xf32> to vector<1x64xf32>
    %c0_i32_60 = arith.constant 0 : i32
    %128 = arith.addi %c0_i32_60, %c1_i32 : i32
    %129 = arith.index_cast %128 : i32 to index
    %c0_61 = arith.constant 0 : index
    %130 = vector.load %arg16[%129, %c0_61] : memref<8x64xf32, #tpu.memory_space<vmem>>, vector<1x64xf32>
    tpu.vector_store %arg16[%129, %c0_61], %127 {strides = array<i32>} : memref<8x64xf32, #tpu.memory_space<vmem>>, vector<1x64xf32>,
    %c2_i32 = arith.constant 2 : i32
    %131 = vector.broadcast %c2_i32 : i32 to vector<1x8xi32>
    %132 = arith.cmpi eq, %63, %131 : vector<1x8xi32>
    %133 = arith.extui %132 : vector<1x8xi1> to vector<1x8xi32>
    %134 = arith.sitofp %133 : vector<1x8xi32> to vector<1x8xf32>
    %135 = vector.broadcast %134 : vector<1x8xf32> to vector<16x8xf32>
    %136 = arith.mulf %61, %135 : vector<16x8xf32>
    %cst_62 = arith.constant dense<0.000000e+00> : vector<16xf32>
    %137 = vector.multi_reduction <add>, %136, %cst_62 [1] : vector<16x8xf32> to vector<16xf32>
    %138 = vector.shape_cast %137 : vector<16xf32> to vector<16x1xf32>
    %139 = vector.broadcast %134 : vector<1x8xf32> to vector<16x8xf32>
    %140 = arith.mulf %62, %139 : vector<16x8xf32>
    %cst_63 = arith.constant dense<0.000000e+00> : vector<16xf32>
    %141 = vector.multi_reduction <add>, %140, %cst_63 [1] : vector<16x8xf32> to vector<16xf32>
    %142 = vector.shape_cast %141 : vector<16xf32> to vector<16x1xf32>
    %c0_i32_64 = arith.constant 0 : i32
    %143 = arith.addi %c0_i32_64, %c2_i32 : i32
    %144 = arith.index_cast %143 : i32 to index
    %c0_65 = arith.constant 0 : index
    %145 = vector.load %arg14[%144, %c0_65] : memref<8x64xf32, #tpu.memory_space<vmem>>, vector<1x64xf32>
    %c0_i32_66 = arith.constant 0 : i32
    %146 = arith.addi %c0_i32_66, %c2_i32 : i32
    %147 = arith.index_cast %146 : i32 to index
    %c0_67 = arith.constant 0 : index
    %148 = vector.load %arg15[%147, %c0_67] : memref<8x64xf32, #tpu.memory_space<vmem>>, vector<1x64xf32>
    %149 = vector.broadcast %145 : vector<1x64xf32> to vector<16x64xf32>
    %150 = arith.mulf %149, %60 : vector<16x64xf32>
    %151 = math.exp %150 : vector<16x64xf32>
    %152 = arith.mulf %151, %123 : vector<16x64xf32>
    %153 = vector.broadcast %138 : vector<16x1xf32> to vector<16x64xf32>
    %154 = vector.broadcast %148 : vector<1x64xf32> to vector<16x64xf32>
    %155 = arith.mulf %153, %154 : vector<16x64xf32>
    %156 = arith.addf %152, %155 : vector<16x64xf32>
    %157 = vector.broadcast %142 : vector<16x1xf32> to vector<16x64xf32>
    %158 = arith.mulf %156, %157 : vector<16x64xf32>
    %cst_68 = arith.constant dense<0.000000e+00> : vector<64xf32>
    %159 = vector.multi_reduction <add>, %158, %cst_68 [0] : vector<16x64xf32> to vector<64xf32>
    %160 = vector.shape_cast %159 : vector<64xf32> to vector<1x64xf32>
    %c0_i32_69 = arith.constant 0 : i32
    %161 = arith.addi %c0_i32_69, %c2_i32 : i32
    %162 = arith.index_cast %161 : i32 to index
    %c0_70 = arith.constant 0 : index
    %163 = vector.load %arg16[%162, %c0_70] : memref<8x64xf32, #tpu.memory_space<vmem>>, vector<1x64xf32>
    tpu.vector_store %arg16[%162, %c0_70], %160 {strides = array<i32>} : memref<8x64xf32, #tpu.memory_space<vmem>>, vector<1x64xf32>,
    %c3_i32 = arith.constant 3 : i32
    %164 = vector.broadcast %c3_i32 : i32 to vector<1x8xi32>
    %165 = arith.cmpi eq, %63, %164 : vector<1x8xi32>
    %166 = arith.extui %165 : vector<1x8xi1> to vector<1x8xi32>
    %167 = arith.sitofp %166 : vector<1x8xi32> to vector<1x8xf32>
    %168 = vector.broadcast %167 : vector<1x8xf32> to vector<16x8xf32>
    %169 = arith.mulf %61, %168 : vector<16x8xf32>
    %cst_71 = arith.constant dense<0.000000e+00> : vector<16xf32>
    %170 = vector.multi_reduction <add>, %169, %cst_71 [1] : vector<16x8xf32> to vector<16xf32>
    %171 = vector.shape_cast %170 : vector<16xf32> to vector<16x1xf32>
    %172 = vector.broadcast %167 : vector<1x8xf32> to vector<16x8xf32>
    %173 = arith.mulf %62, %172 : vector<16x8xf32>
    %cst_72 = arith.constant dense<0.000000e+00> : vector<16xf32>
    %174 = vector.multi_reduction <add>, %173, %cst_72 [1] : vector<16x8xf32> to vector<16xf32>
    %175 = vector.shape_cast %174 : vector<16xf32> to vector<16x1xf32>
    %c0_i32_73 = arith.constant 0 : i32
    %176 = arith.addi %c0_i32_73, %c3_i32 : i32
    %177 = arith.index_cast %176 : i32 to index
    %c0_74 = arith.constant 0 : index
    %178 = vector.load %arg14[%177, %c0_74] : memref<8x64xf32, #tpu.memory_space<vmem>>, vector<1x64xf32>
    %c0_i32_75 = arith.constant 0 : i32
    %179 = arith.addi %c0_i32_75, %c3_i32 : i32
    %180 = arith.index_cast %179 : i32 to index
    %c0_76 = arith.constant 0 : index
    %181 = vector.load %arg15[%180, %c0_76] : memref<8x64xf32, #tpu.memory_space<vmem>>, vector<1x64xf32>
    %182 = vector.broadcast %178 : vector<1x64xf32> to vector<16x64xf32>
    %183 = arith.mulf %182, %60 : vector<16x64xf32>
    %184 = math.exp %183 : vector<16x64xf32>
    %185 = arith.mulf %184, %156 : vector<16x64xf32>
    %186 = vector.broadcast %171 : vector<16x1xf32> to vector<16x64xf32>
    %187 = vector.broadcast %181 : vector<1x64xf32> to vector<16x64xf32>
    %188 = arith.mulf %186, %187 : vector<16x64xf32>
    %189 = arith.addf %185, %188 : vector<16x64xf32>
    %190 = vector.broadcast %175 : vector<16x1xf32> to vector<16x64xf32>
    %191 = arith.mulf %189, %190 : vector<16x64xf32>
    %cst_77 = arith.constant dense<0.000000e+00> : vector<64xf32>
    %192 = vector.multi_reduction <add>, %191, %cst_77 [0] : vector<16x64xf32> to vector<64xf32>
    %193 = vector.shape_cast %192 : vector<64xf32> to vector<1x64xf32>
    %c0_i32_78 = arith.constant 0 : i32
    %194 = arith.addi %c0_i32_78, %c3_i32 : i32
    %195 = arith.index_cast %194 : i32 to index
    %c0_79 = arith.constant 0 : index
    %196 = vector.load %arg16[%195, %c0_79] : memref<8x64xf32, #tpu.memory_space<vmem>>, vector<1x64xf32>
    tpu.vector_store %arg16[%195, %c0_79], %193 {strides = array<i32>} : memref<8x64xf32, #tpu.memory_space<vmem>>, vector<1x64xf32>,
    %c4_i32 = arith.constant 4 : i32
    %197 = vector.broadcast %c4_i32 : i32 to vector<1x8xi32>
    %198 = arith.cmpi eq, %63, %197 : vector<1x8xi32>
    %199 = arith.extui %198 : vector<1x8xi1> to vector<1x8xi32>
    %200 = arith.sitofp %199 : vector<1x8xi32> to vector<1x8xf32>
    %201 = vector.broadcast %200 : vector<1x8xf32> to vector<16x8xf32>
    %202 = arith.mulf %61, %201 : vector<16x8xf32>
    %cst_80 = arith.constant dense<0.000000e+00> : vector<16xf32>
    %203 = vector.multi_reduction <add>, %202, %cst_80 [1] : vector<16x8xf32> to vector<16xf32>
    %204 = vector.shape_cast %203 : vector<16xf32> to vector<16x1xf32>
    %205 = vector.broadcast %200 : vector<1x8xf32> to vector<16x8xf32>
    %206 = arith.mulf %62, %205 : vector<16x8xf32>
    %cst_81 = arith.constant dense<0.000000e+00> : vector<16xf32>
    %207 = vector.multi_reduction <add>, %206, %cst_81 [1] : vector<16x8xf32> to vector<16xf32>
    %208 = vector.shape_cast %207 : vector<16xf32> to vector<16x1xf32>
    %c0_i32_82 = arith.constant 0 : i32
    %209 = arith.addi %c0_i32_82, %c4_i32 : i32
    %210 = arith.index_cast %209 : i32 to index
    %c0_83 = arith.constant 0 : index
    %211 = vector.load %arg14[%210, %c0_83] : memref<8x64xf32, #tpu.memory_space<vmem>>, vector<1x64xf32>
    %c0_i32_84 = arith.constant 0 : i32
    %212 = arith.addi %c0_i32_84, %c4_i32 : i32
    %213 = arith.index_cast %212 : i32 to index
    %c0_85 = arith.constant 0 : index
    %214 = vector.load %arg15[%213, %c0_85] : memref<8x64xf32, #tpu.memory_space<vmem>>, vector<1x64xf32>
    %215 = vector.broadcast %211 : vector<1x64xf32> to vector<16x64xf32>
    %216 = arith.mulf %215, %60 : vector<16x64xf32>
    %217 = math.exp %216 : vector<16x64xf32>
    %218 = arith.mulf %217, %189 : vector<16x64xf32>
    %219 = vector.broadcast %204 : vector<16x1xf32> to vector<16x64xf32>
    %220 = vector.broadcast %214 : vector<1x64xf32> to vector<16x64xf32>
    %221 = arith.mulf %219, %220 : vector<16x64xf32>
    %222 = arith.addf %218, %221 : vector<16x64xf32>
    %223 = vector.broadcast %208 : vector<16x1xf32> to vector<16x64xf32>
    %224 = arith.mulf %222, %223 : vector<16x64xf32>
    %cst_86 = arith.constant dense<0.000000e+00> : vector<64xf32>
    %225 = vector.multi_reduction <add>, %224, %cst_86 [0] : vector<16x64xf32> to vector<64xf32>
    %226 = vector.shape_cast %225 : vector<64xf32> to vector<1x64xf32>
    %c0_i32_87 = arith.constant 0 : i32
    %227 = arith.addi %c0_i32_87, %c4_i32 : i32
    %228 = arith.index_cast %227 : i32 to index
    %c0_88 = arith.constant 0 : index
    %229 = vector.load %arg16[%228, %c0_88] : memref<8x64xf32, #tpu.memory_space<vmem>>, vector<1x64xf32>
    tpu.vector_store %arg16[%228, %c0_88], %226 {strides = array<i32>} : memref<8x64xf32, #tpu.memory_space<vmem>>, vector<1x64xf32>,
    %c5_i32 = arith.constant 5 : i32
    %230 = vector.broadcast %c5_i32 : i32 to vector<1x8xi32>
    %231 = arith.cmpi eq, %63, %230 : vector<1x8xi32>
    %232 = arith.extui %231 : vector<1x8xi1> to vector<1x8xi32>
    %233 = arith.sitofp %232 : vector<1x8xi32> to vector<1x8xf32>
    %234 = vector.broadcast %233 : vector<1x8xf32> to vector<16x8xf32>
    %235 = arith.mulf %61, %234 : vector<16x8xf32>
    %cst_89 = arith.constant dense<0.000000e+00> : vector<16xf32>
    %236 = vector.multi_reduction <add>, %235, %cst_89 [1] : vector<16x8xf32> to vector<16xf32>
    %237 = vector.shape_cast %236 : vector<16xf32> to vector<16x1xf32>
    %238 = vector.broadcast %233 : vector<1x8xf32> to vector<16x8xf32>
    %239 = arith.mulf %62, %238 : vector<16x8xf32>
    %cst_90 = arith.constant dense<0.000000e+00> : vector<16xf32>
    %240 = vector.multi_reduction <add>, %239, %cst_90 [1] : vector<16x8xf32> to vector<16xf32>
    %241 = vector.shape_cast %240 : vector<16xf32> to vector<16x1xf32>
    %c0_i32_91 = arith.constant 0 : i32
    %242 = arith.addi %c0_i32_91, %c5_i32 : i32
    %243 = arith.index_cast %242 : i32 to index
    %c0_92 = arith.constant 0 : index
    %244 = vector.load %arg14[%243, %c0_92] : memref<8x64xf32, #tpu.memory_space<vmem>>, vector<1x64xf32>
    %c0_i32_93 = arith.constant 0 : i32
    %245 = arith.addi %c0_i32_93, %c5_i32 : i32
    %246 = arith.index_cast %245 : i32 to index
    %c0_94 = arith.constant 0 : index
    %247 = vector.load %arg15[%246, %c0_94] : memref<8x64xf32, #tpu.memory_space<vmem>>, vector<1x64xf32>
    %248 = vector.broadcast %244 : vector<1x64xf32> to vector<16x64xf32>
    %249 = arith.mulf %248, %60 : vector<16x64xf32>
    %250 = math.exp %249 : vector<16x64xf32>
    %251 = arith.mulf %250, %222 : vector<16x64xf32>
    %252 = vector.broadcast %237 : vector<16x1xf32> to vector<16x64xf32>
    %253 = vector.broadcast %247 : vector<1x64xf32> to vector<16x64xf32>
    %254 = arith.mulf %252, %253 : vector<16x64xf32>
    %255 = arith.addf %251, %254 : vector<16x64xf32>
    %256 = vector.broadcast %241 : vector<16x1xf32> to vector<16x64xf32>
    %257 = arith.mulf %255, %256 : vector<16x64xf32>
    %cst_95 = arith.constant dense<0.000000e+00> : vector<64xf32>
    %258 = vector.multi_reduction <add>, %257, %cst_95 [0] : vector<16x64xf32> to vector<64xf32>
    %259 = vector.shape_cast %258 : vector<64xf32> to vector<1x64xf32>
    %c0_i32_96 = arith.constant 0 : i32
    %260 = arith.addi %c0_i32_96, %c5_i32 : i32
    %261 = arith.index_cast %260 : i32 to index
    %c0_97 = arith.constant 0 : index
    %262 = vector.load %arg16[%261, %c0_97] : memref<8x64xf32, #tpu.memory_space<vmem>>, vector<1x64xf32>
    tpu.vector_store %arg16[%261, %c0_97], %259 {strides = array<i32>} : memref<8x64xf32, #tpu.memory_space<vmem>>, vector<1x64xf32>,
    %c6_i32 = arith.constant 6 : i32
    %263 = vector.broadcast %c6_i32 : i32 to vector<1x8xi32>
    %264 = arith.cmpi eq, %63, %263 : vector<1x8xi32>
    %265 = arith.extui %264 : vector<1x8xi1> to vector<1x8xi32>
    %266 = arith.sitofp %265 : vector<1x8xi32> to vector<1x8xf32>
    %267 = vector.broadcast %266 : vector<1x8xf32> to vector<16x8xf32>
    %268 = arith.mulf %61, %267 : vector<16x8xf32>
    %cst_98 = arith.constant dense<0.000000e+00> : vector<16xf32>
    %269 = vector.multi_reduction <add>, %268, %cst_98 [1] : vector<16x8xf32> to vector<16xf32>
    %270 = vector.shape_cast %269 : vector<16xf32> to vector<16x1xf32>
    %271 = vector.broadcast %266 : vector<1x8xf32> to vector<16x8xf32>
    %272 = arith.mulf %62, %271 : vector<16x8xf32>
    %cst_99 = arith.constant dense<0.000000e+00> : vector<16xf32>
    %273 = vector.multi_reduction <add>, %272, %cst_99 [1] : vector<16x8xf32> to vector<16xf32>
    %274 = vector.shape_cast %273 : vector<16xf32> to vector<16x1xf32>
    %c0_i32_100 = arith.constant 0 : i32
    %275 = arith.addi %c0_i32_100, %c6_i32 : i32
    %276 = arith.index_cast %275 : i32 to index
    %c0_101 = arith.constant 0 : index
    %277 = vector.load %arg14[%276, %c0_101] : memref<8x64xf32, #tpu.memory_space<vmem>>, vector<1x64xf32>
    %c0_i32_102 = arith.constant 0 : i32
    %278 = arith.addi %c0_i32_102, %c6_i32 : i32
    %279 = arith.index_cast %278 : i32 to index
    %c0_103 = arith.constant 0 : index
    %280 = vector.load %arg15[%279, %c0_103] : memref<8x64xf32, #tpu.memory_space<vmem>>, vector<1x64xf32>
    %281 = vector.broadcast %277 : vector<1x64xf32> to vector<16x64xf32>
    %282 = arith.mulf %281, %60 : vector<16x64xf32>
    %283 = math.exp %282 : vector<16x64xf32>
    %284 = arith.mulf %283, %255 : vector<16x64xf32>
    %285 = vector.broadcast %270 : vector<16x1xf32> to vector<16x64xf32>
    %286 = vector.broadcast %280 : vector<1x64xf32> to vector<16x64xf32>
    %287 = arith.mulf %285, %286 : vector<16x64xf32>
    %288 = arith.addf %284, %287 : vector<16x64xf32>
    %289 = vector.broadcast %274 : vector<16x1xf32> to vector<16x64xf32>
    %290 = arith.mulf %288, %289 : vector<16x64xf32>
    %cst_104 = arith.constant dense<0.000000e+00> : vector<64xf32>
    %291 = vector.multi_reduction <add>, %290, %cst_104 [0] : vector<16x64xf32> to vector<64xf32>
    %292 = vector.shape_cast %291 : vector<64xf32> to vector<1x64xf32>
    %c0_i32_105 = arith.constant 0 : i32
    %293 = arith.addi %c0_i32_105, %c6_i32 : i32
    %294 = arith.index_cast %293 : i32 to index
    %c0_106 = arith.constant 0 : index
    %295 = vector.load %arg16[%294, %c0_106] : memref<8x64xf32, #tpu.memory_space<vmem>>, vector<1x64xf32>
    tpu.vector_store %arg16[%294, %c0_106], %292 {strides = array<i32>} : memref<8x64xf32, #tpu.memory_space<vmem>>, vector<1x64xf32>,
    %c7_i32 = arith.constant 7 : i32
    %296 = vector.broadcast %c7_i32 : i32 to vector<1x8xi32>
    %297 = arith.cmpi eq, %63, %296 : vector<1x8xi32>
    %298 = arith.extui %297 : vector<1x8xi1> to vector<1x8xi32>
    %299 = arith.sitofp %298 : vector<1x8xi32> to vector<1x8xf32>
    %300 = vector.broadcast %299 : vector<1x8xf32> to vector<16x8xf32>
    %301 = arith.mulf %61, %300 : vector<16x8xf32>
    %cst_107 = arith.constant dense<0.000000e+00> : vector<16xf32>
    %302 = vector.multi_reduction <add>, %301, %cst_107 [1] : vector<16x8xf32> to vector<16xf32>
    %303 = vector.shape_cast %302 : vector<16xf32> to vector<16x1xf32>
    %304 = vector.broadcast %299 : vector<1x8xf32> to vector<16x8xf32>
    %305 = arith.mulf %62, %304 : vector<16x8xf32>
    %cst_108 = arith.constant dense<0.000000e+00> : vector<16xf32>
    %306 = vector.multi_reduction <add>, %305, %cst_108 [1] : vector<16x8xf32> to vector<16xf32>
    %307 = vector.shape_cast %306 : vector<16xf32> to vector<16x1xf32>
    %c0_i32_109 = arith.constant 0 : i32
    %308 = arith.addi %c0_i32_109, %c7_i32 : i32
    %309 = arith.index_cast %308 : i32 to index
    %c0_110 = arith.constant 0 : index
    %310 = vector.load %arg14[%309, %c0_110] : memref<8x64xf32, #tpu.memory_space<vmem>>, vector<1x64xf32>
    %c0_i32_111 = arith.constant 0 : i32
    %311 = arith.addi %c0_i32_111, %c7_i32 : i32
    %312 = arith.index_cast %311 : i32 to index
    %c0_112 = arith.constant 0 : index
    %313 = vector.load %arg15[%312, %c0_112] : memref<8x64xf32, #tpu.memory_space<vmem>>, vector<1x64xf32>
    %314 = vector.broadcast %310 : vector<1x64xf32> to vector<16x64xf32>
    %315 = arith.mulf %314, %60 : vector<16x64xf32>
    %316 = math.exp %315 : vector<16x64xf32>
    %317 = arith.mulf %316, %288 : vector<16x64xf32>
    %318 = vector.broadcast %303 : vector<16x1xf32> to vector<16x64xf32>
    %319 = vector.broadcast %313 : vector<1x64xf32> to vector<16x64xf32>
    %320 = arith.mulf %318, %319 : vector<16x64xf32>
    %321 = arith.addf %317, %320 : vector<16x64xf32>
    %322 = vector.broadcast %307 : vector<16x1xf32> to vector<16x64xf32>
    %323 = arith.mulf %321, %322 : vector<16x64xf32>
    %cst_113 = arith.constant dense<0.000000e+00> : vector<64xf32>
    %324 = vector.multi_reduction <add>, %323, %cst_113 [0] : vector<16x64xf32> to vector<64xf32>
    %325 = vector.shape_cast %324 : vector<64xf32> to vector<1x64xf32>
    %c0_i32_114 = arith.constant 0 : i32
    %326 = arith.addi %c0_i32_114, %c7_i32 : i32
    %327 = arith.index_cast %326 : i32 to index
    %c0_115 = arith.constant 0 : index
    %328 = vector.load %arg16[%327, %c0_115] : memref<8x64xf32, #tpu.memory_space<vmem>>, vector<1x64xf32>
    tpu.vector_store %arg16[%327, %c0_115], %325 {strides = array<i32>} : memref<8x64xf32, #tpu.memory_space<vmem>>, vector<1x64xf32>,
    %c8_i32 = arith.constant 8 : i32
    %c0_116 = arith.constant 0 : index
    %c0_117 = arith.constant 0 : index
    %329 = vector.load %arg16[%c0_116, %c0_117] : memref<8x64xf32, #tpu.memory_space<vmem>>, vector<8x64xf32>
    %cst_118 = arith.constant 0.000000e+00 : f32
    %330 = vector.broadcast %cst_118 : f32 to vector<8x64xf32>
    %331 = arith.subf %330, %8 : vector<8x64xf32>
    %332 = math.exp %331 : vector<8x64xf32>
    %cst_119 = arith.constant 1.000000e+00 : f32
    %333 = vector.broadcast %cst_119 : f32 to vector<8x64xf32>
    %334 = arith.addf %333, %332 : vector<8x64xf32>
    %cst_120 = arith.constant 1.000000e+00 : f32
    %335 = vector.broadcast %cst_120 : f32 to vector<8x64xf32>
    %336 = arith.divf %335, %334 : vector<8x64xf32>
    %337 = arith.mulf %8, %336 : vector<8x64xf32>
    %338 = arith.mulf %329, %337 : vector<8x64xf32>
    %c0_121 = arith.constant 0 : index
    %c0_122 = arith.constant 0 : index
    %339 = vector.load %arg10[%c0_121, %c0_122] : memref<64x32xf32, #tpu.memory_space<vmem>>, vector<64x32xf32>
    %cst_123 = arith.constant dense<0.000000e+00> : vector<8x32xf32>
    %340 = tpu.matmul %338, %339, %cst_123 {dimension_numbers = #tpu.dot_dimension_numbers<[1], [0], [0], [1], [0, 0, 1, 1], [], []>} : vector<8x64xf32>, vector<64x32xf32>, vector<8x32xf32> -> vector<8x32xf32>
    %c0_124 = arith.constant 0 : index
    %c0_125 = arith.constant 0 : index
    %341 = vector.load %arg11[%c0_124, %c0_125] : memref<1x32xf32, #tpu.memory_space<vmem>>, vector<1x32xf32>
    %342 = vector.broadcast %341 : vector<1x32xf32> to vector<8x32xf32>
    %343 = arith.addf %340, %342 : vector<8x32xf32>
    %c0_126 = arith.constant 0 : index
    %c0_127 = arith.constant 0 : index
    %c0_128 = arith.constant 0 : index
    %344 = vector.load %arg12[%c0_126, %c0_127, %c0_128] : memref<1x8x32xf32, #tpu.memory_space<vmem>>, vector<1x8x32xf32>
    %345 = vector.shape_cast %344 : vector<1x8x32xf32> to vector<8x32xf32>
    %346 = vector.shape_cast %343 : vector<8x32xf32> to vector<1x8x32xf32>
    tpu.vector_store %arg12[%c0_126, %c0_127, %c0_128], %346 {strides = array<i32>} : memref<1x8x32xf32, #tpu.memory_space<vmem>>, vector<1x8x32xf32>,
    return
  }
  func.func @transform_0(%arg0: i32) -> (i32, i32, i32) {
    %c0_i32 = arith.constant 0 : i32
    %c0_i32_0 = arith.constant 0 : i32
    %c0_i32_1 = arith.constant 0 : i32
    return %arg0, %c0_i32, %c0_i32_0 : i32, i32, i32
  }
  func.func @transform_1(%arg0: i32) -> (i32, i32) {
    %c0_i32 = arith.constant 0 : i32
    %c0_i32_0 = arith.constant 0 : i32
    %c0_i32_1 = arith.constant 0 : i32
    return %c0_i32, %c0_i32_0 : i32, i32
  }
  func.func @transform_2(%arg0: i32) -> (i32, i32) {
    %c0_i32 = arith.constant 0 : i32
    %c0_i32_0 = arith.constant 0 : i32
    %c0_i32_1 = arith.constant 0 : i32
    return %c0_i32, %c0_i32_0 : i32, i32
  }
  func.func @transform_3(%arg0: i32) -> (i32, i32) {
    %c0_i32 = arith.constant 0 : i32
    %c0_i32_0 = arith.constant 0 : i32
    %c0_i32_1 = arith.constant 0 : i32
    return %c0_i32, %c0_i32_0 : i32, i32
  }
  func.func @transform_4(%arg0: i32) -> (i32, i32) {
    %c0_i32 = arith.constant 0 : i32
    %c0_i32_0 = arith.constant 0 : i32
    %c0_i32_1 = arith.constant 0 : i32
    return %c0_i32, %c0_i32_0 : i32, i32
  }
  func.func @transform_5(%arg0: i32) -> (i32, i32) {
    %c0_i32 = arith.constant 0 : i32
    %c0_i32_0 = arith.constant 0 : i32
    %c0_i32_1 = arith.constant 0 : i32
    return %c0_i32, %c0_i32_0 : i32, i32
  }
  func.func @transform_6(%arg0: i32) -> (i32, i32) {
    %c0_i32 = arith.constant 0 : i32
    %c0_i32_0 = arith.constant 0 : i32
    %c0_i32_1 = arith.constant 0 : i32
    return %c0_i32, %c0_i32_0 : i32, i32
  }
  func.func @transform_7(%arg0: i32) -> (i32, i32) {
    %c0_i32 = arith.constant 0 : i32
    %c0_i32_0 = arith.constant 0 : i32
    %c0_i32_1 = arith.constant 0 : i32
    return %c0_i32, %c0_i32_0 : i32, i32
  }
  func.func @transform_8(%arg0: i32) -> (i32, i32) {
    %c0_i32 = arith.constant 0 : i32
    %c0_i32_0 = arith.constant 0 : i32
    %c0_i32_1 = arith.constant 0 : i32
    return %c0_i32, %c0_i32_0 : i32, i32
  }
  func.func @transform_9(%arg0: i32) -> (i32, i32) {
    %c0_i32 = arith.constant 0 : i32
    %c0_i32_0 = arith.constant 0 : i32
    %c0_i32_1 = arith.constant 0 : i32
    return %c0_i32, %c0_i32_0 : i32, i32
  }
  func.func @transform_10(%arg0: i32) -> (i32, i32) {
    %c0_i32 = arith.constant 0 : i32
    %c0_i32_0 = arith.constant 0 : i32
    %c0_i32_1 = arith.constant 0 : i32
    return %c0_i32, %c0_i32_0 : i32, i32
  }
  func.func @transform_11(%arg0: i32) -> (i32, i32, i32) {
    %c0_i32 = arith.constant 0 : i32
    %c0_i32_0 = arith.constant 0 : i32
    %c0_i32_1 = arith.constant 0 : i32
    return %arg0, %c0_i32, %c0_i32_0 : i32, i32, i32
  }
}

</mosaic_0001>

<llo_original>
// kernel: parallel_mamba_pallas.1
$region0: #{parallel_mamba_pallas.1}
  #allocation0 [shape = 'u32[]', space=smem, size = 0x4, offset = 0x4, fixed_abs, tag = 'smem constant byte address 0x4 - core index']
  #allocation1 [shape = 'u32[144,128]{1,0:T(1,128)}', space=vmem, size = 0x12000, scoped, tag = 'internal scratch']
  #allocation2 [shape = 'f32[10,64]{1,0:T(8,128)}', space=vmem, size = 0x2000, scoped, tag = 'scratch operand']
  #allocation3 [shape = 'f32[8,64]{1,0:T(8,128)}', space=vmem, size = 0x1000, scoped, tag = 'scratch operand']
  #allocation4 [shape = 'f32[8,64]{1,0:T(8,128)}', space=vmem, size = 0x1000, scoped, tag = 'scratch operand']
  #allocation5 [shape = 'f32[8,64]{1,0:T(8,128)}', space=vmem, size = 0x1000, scoped, tag = 'scratch operand']
  %s0 = inlined_call_operand.vmem [shape: f32[2,8,32], index: 0, kind: input, shape index: {}]
  %s1 = inlined_call_operand.vmem [shape: f32[32,128], index: 1, kind: input, shape index: {}]
  %s2 = inlined_call_operand.vmem [shape: f32[1,128], index: 2, kind: input, shape index: {}]
  %s3 = inlined_call_operand.vmem [shape: f32[3,64], index: 3, kind: input, shape index: {}]
  %s4 = inlined_call_operand.vmem [shape: f32[1,64], index: 4, kind: input, shape index: {}]
  %s5 = inlined_call_operand.vmem [shape: f32[64,40], index: 5, kind: input, shape index: {}]
  %s6 = inlined_call_operand.vmem [shape: f32[8,64], index: 6, kind: input, shape index: {}]
  %s7 = inlined_call_operand.vmem [shape: f32[1,64], index: 7, kind: input, shape index: {}]
  %s8 = inlined_call_operand.vmem [shape: f32[16,64], index: 8, kind: input, shape index: {}]
  %s9 = inlined_call_operand.vmem [shape: f32[64,32], index: 9, kind: input, shape index: {}]
  %s10 = inlined_call_operand.vmem [shape: f32[1,32], index: 10, kind: input, shape index: {}]
  %s11 = inlined_call_operand.hbm [shape: f32[2,8,32], index: 11, kind: output, shape index: {}]
  %s12 = sld [smem:[#allocation0]]
  $region77: #{parallel_mamba_pallas.1} parent=0
    _
  %s14 = ssub.s32 1, %s12
  %s15 = scalar_select 0, %s14, %s12
  $region1: #{parallel_mamba_pallas.1} parent=0
    #allocation6 [shape = 'u8[8192]{0}', space=vmem, size = 0x2000, scoped, tag = 'output window, operand 0']
    #allocation7 [shape = 's32[2]{0}', space=sflag, size = 0x8, scoped, tag = 'scoped memory for parallel_mamba_pallas.1']
    %16 = vsyncpa [#allocation7], 0
    %s17 = scalar_lea.sflag [#allocation7], 1
    %18 = vsyncpa %s17, 0
    loop: start=0, step=1, limit=4
    $region2: #{parallel_mamba_pallas.1} parent=1 // loop_pre_header
      _
    $region3: #{parallel_mamba_pallas.1} parent=1 // loop_header
      %s20 = sphi 0, %s24
      %p21 = scmp.ge.s32.totalorder %s20, 4
      %s30 = sphi 0, %s32
      %s33 = sphi 0, %s30
      %s34 = sphi 0, %s33
      %s50 = sphi 0, %s34
      %s54 = sphi 0, %s54
      %s56 = sphi 0, %s54
      %s57 = sphi 0, %s56
      %s71 = sphi 0, %s57
      %s75 = sphi 0, %s75
      %s77 = sphi 0, %s75
      %s78 = sphi 0, %s77
      %s92 = sphi 0, %s78
      %s96 = sphi 0, %s96
      %s98 = sphi 0, %s96
      %s99 = sphi 0, %s98
      %s113 = sphi 0, %s99
      %s117 = sphi 0, %s117
      %s119 = sphi 0, %s117
      %s120 = sphi 0, %s119
      %s134 = sphi 0, %s120
      %s138 = sphi 0, %s138
      %s140 = sphi 0, %s138
      %s141 = sphi 0, %s140
      %s155 = sphi 0, %s141
      %s159 = sphi 0, %s159
      %s161 = sphi 0, %s159
      %s162 = sphi 0, %s161
      %s176 = sphi 0, %s162
      %s180 = sphi 0, %s180
      %s182 = sphi 0, %s180
      %s183 = sphi 0, %s182
      %s197 = sphi 0, %s183
      %s201 = sphi 0, %s201
      %s203 = sphi 0, %s201
      %s204 = sphi 0, %s203
      %s218 = sphi 0, %s204
      %s222 = sphi 0, %s222
      %s224 = sphi 0, %s222
      %s225 = sphi 0, %s224
      %s239 = sphi 0, %s225
      %s243 = sphi 0, %s243
      %s245 = sphi 0, %s243
      %s246 = sphi 0, %s245
      %s260 = sphi 0, %s246
      %s266 = sphi 0, %s268
      %s269 = sphi 0, %s266
      %s270 = sphi 0, %s269
      %s286 = sphi 0, %s270
    $region4: #{parallel_mamba_pallas.1} parent=1 // loop_header_branch
      %23 = sbr.rel (%p21) target = $region8
    $region5: #{parallel_mamba_pallas.1} parent=1 // loop_body
      %s25 = ssub.s32 %s20, 1
      %s26 = ssub.s32 %s20, 2
      %s27 = sadd.s32 %s20, 1
      %s28 = ssub.s32 %s20, %s27
      %p29 = scmp.eq.s32.totalorder %s28, 0
      %s31 = sadd.s32 %s30, 1
      %s32 = scalar_select %p29, %s30, %s31
      %p35 = pneg %p29
      %p36 = scmp.eq.s32.totalorder %s20, 1
      %p37 = por %p35, %p36
      %p38 = scmp.ne.s32.totalorder %s30, %s33
      %p39 = scmp.eq.s32.totalorder %s20, 0
      %p40 = por %p38, %p39
      %p41 = scmp.ne.s32.totalorder %s30, %s33
      %p42 = scmp.eq.s32.totalorder %s25, 1
      %p43 = por %p41, %p42
      %p44 = scmp.ne.s32.totalorder %s33, %s34
      %p45 = scmp.eq.s32.totalorder %s25, 0
      %p46 = por %p44, %p45
      %p47 = scmp.ne.s32.totalorder %s33, %s34
      %p48 = scmp.eq.s32.totalorder %s26, 1
      %p49 = por %p47, %p48
      %p51 = scmp.ne.s32.totalorder %s34, %s50
      %p52 = scmp.eq.s32.totalorder %s26, 0
      %p53 = por %p51, %p52
      %s55 = sadd.s32 %s54, 1
      %p58 = scmp.eq.s32.totalorder %s20, 1
      %p59 = scmp.ne.s32.totalorder %s54, %s56
      %p60 = scmp.eq.s32.totalorder %s20, 0
      %p61 = por %p59, %p60
      %p62 = scmp.ne.s32.totalorder %s54, %s56
      %p63 = scmp.eq.s32.totalorder %s25, 1
      %p64 = por %p62, %p63
      %p65 = scmp.ne.s32.totalorder %s56, %s57
      %p66 = scmp.eq.s32.totalorder %s25, 0
      %p67 = por %p65, %p66
      %p68 = scmp.ne.s32.totalorder %s56, %s57
      %p69 = scmp.eq.s32.totalorder %s26, 1
      %p70 = por %p68, %p69
      %p72 = scmp.ne.s32.totalorder %s57, %s71
      %p73 = scmp.eq.s32.totalorder %s26, 0
      %p74 = por %p72, %p73
      %s76 = sadd.s32 %s75, 1
      %p79 = scmp.eq.s32.totalorder %s20, 1
      %p80 = scmp.ne.s32.totalorder %s75, %s77
      %p81 = scmp.eq.s32.totalorder %s20, 0
      %p82 = por %p80, %p81
      %p83 = scmp.ne.s32.totalorder %s75, %s77
      %p84 = scmp.eq.s32.totalorder %s25, 1
      %p85 = por %p83, %p84
      %p86 = scmp.ne.s32.totalorder %s77, %s78
      %p87 = scmp.eq.s32.totalorder %s25, 0
      %p88 = por %p86, %p87
      %p89 = scmp.ne.s32.totalorder %s77, %s78
      %p90 = scmp.eq.s32.totalorder %s26, 1
      %p91 = por %p89, %p90
      %p93 = scmp.ne.s32.totalorder %s78, %s92
      %p94 = scmp.eq.s32.totalorder %s26, 0
      %p95 = por %p93, %p94
      %s97 = sadd.s32 %s96, 1
      %p100 = scmp.eq.s32.totalorder %s20, 1
      %p101 = scmp.ne.s32.totalorder %s96, %s98
      %p102 = scmp.eq.s32.totalorder %s20, 0
      %p103 = por %p101, %p102
      %p104 = scmp.ne.s32.totalorder %s96, %s98
      %p105 = scmp.eq.s32.totalorder %s25, 1
      %p106 = por %p104, %p105
      %p107 = scmp.ne.s32.totalorder %s98, %s99
      %p108 = scmp.eq.s32.totalorder %s25, 0
      %p109 = por %p107, %p108
      %p110 = scmp.ne.s32.totalorder %s98, %s99
      %p111 = scmp.eq.s32.totalorder %s26, 1
      %p112 = por %p110, %p111
      %p114 = scmp.ne.s32.totalorder %s99, %s113
      %p115 = scmp.eq.s32.totalorder %s26, 0
      %p116 = por %p114, %p115
      %s118 = sadd.s32 %s117, 1
      %p121 = scmp.eq.s32.totalorder %s20, 1
      %p122 = scmp.ne.s32.totalorder %s117, %s119
      %p123 = scmp.eq.s32.totalorder %s20, 0
      %p124 = por %p122, %p123
      %p125 = scmp.ne.s32.totalorder %s117, %s119
      %p126 = scmp.eq.s32.totalorder %s25, 1
      %p127 = por %p125, %p126
      %p128 = scmp.ne.s32.totalorder %s119, %s120
      %p129 = scmp.eq.s32.totalorder %s25, 0
      %p130 = por %p128, %p129
      %p131 = scmp.ne.s32.totalorder %s119, %s120
      %p132 = scmp.eq.s32.totalorder %s26, 1
      %p133 = por %p131, %p132
      %p135 = scmp.ne.s32.totalorder %s120, %s134
      %p136 = scmp.eq.s32.totalorder %s26, 0
      %p137 = por %p135, %p136
      %s139 = sadd.s32 %s138, 1
      %p142 = scmp.eq.s32.totalorder %s20, 1
      %p143 = scmp.ne.s32.totalorder %s138, %s140
      %p144 = scmp.eq.s32.totalorder %s20, 0
      %p145 = por %p143, %p144
      %p146 = scmp.ne.s32.totalorder %s138, %s140
      %p147 = scmp.eq.s32.totalorder %s25, 1
      %p148 = por %p146, %p147
      %p149 = scmp.ne.s32.totalorder %s140, %s141
      %p150 = scmp.eq.s32.totalorder %s25, 0
      %p151 = por %p149, %p150
      %p152 = scmp.ne.s32.totalorder %s140, %s141
      %p153 = scmp.eq.s32.totalorder %s26, 1
      %p154 = por %p152, %p153
      %p156 = scmp.ne.s32.totalorder %s141, %s155
      %p157 = scmp.eq.s32.totalorder %s26, 0
      %p158 = por %p156, %p157
      %s160 = sadd.s32 %s159, 1
      %p163 = scmp.eq.s32.totalorder %s20, 1
      %p164 = scmp.ne.s32.totalorder %s159, %s161
      %p165 = scmp.eq.s32.totalorder %s20, 0
      %p166 = por %p164, %p165
      %p167 = scmp.ne.s32.totalorder %s159, %s161
      %p168 = scmp.eq.s32.totalorder %s25, 1
      %p169 = por %p167, %p168
      %p170 = scmp.ne.s32.totalorder %s161, %s162
      %p171 = scmp.eq.s32.totalorder %s25, 0
      %p172 = por %p170, %p171
      %p173 = scmp.ne.s32.totalorder %s161, %s162
      %p174 = scmp.eq.s32.totalorder %s26, 1
      %p175 = por %p173, %p174
      %p177 = scmp.ne.s32.totalorder %s162, %s176
      %p178 = scmp.eq.s32.totalorder %s26, 0
      %p179 = por %p177, %p178
      %s181 = sadd.s32 %s180, 1
      %p184 = scmp.eq.s32.totalorder %s20, 1
      %p185 = scmp.ne.s32.totalorder %s180, %s182
      %p186 = scmp.eq.s32.totalorder %s20, 0
      %p187 = por %p185, %p186
      %p188 = scmp.ne.s32.totalorder %s180, %s182
      %p189 = scmp.eq.s32.totalorder %s25, 1
      %p190 = por %p188, %p189
      %p191 = scmp.ne.s32.totalorder %s182, %s183
      %p192 = scmp.eq.s32.totalorder %s25, 0
      %p193 = por %p191, %p192
      %p194 = scmp.ne.s32.totalorder %s182, %s183
      %p195 = scmp.eq.s32.totalorder %s26, 1
      %p196 = por %p194, %p195
      %p198 = scmp.ne.s32.totalorder %s183, %s197
      %p199 = scmp.eq.s32.totalorder %s26, 0
      %p200 = por %p198, %p199
      %s202 = sadd.s32 %s201, 1
      %p205 = scmp.eq.s32.totalorder %s20, 1
      %p206 = scmp.ne.s32.totalorder %s201, %s203
      %p207 = scmp.eq.s32.totalorder %s20, 0
      %p208 = por %p206, %p207
      %p209 = scmp.ne.s32.totalorder %s201, %s203
      %p210 = scmp.eq.s32.totalorder %s25, 1
      %p211 = por %p209, %p210
      %p212 = scmp.ne.s32.totalorder %s203, %s204
      %p213 = scmp.eq.s32.totalorder %s25, 0
      %p214 = por %p212, %p213
      %p215 = scmp.ne.s32.totalorder %s203, %s204
      %p216 = scmp.eq.s32.totalorder %s26, 1
      %p217 = por %p215, %p216
      %p219 = scmp.ne.s32.totalorder %s204, %s218
      %p220 = scmp.eq.s32.totalorder %s26, 0
      %p221 = por %p219, %p220
      %s223 = sadd.s32 %s222, 1
      %p226 = scmp.eq.s32.totalorder %s20, 1
      %p227 = scmp.ne.s32.totalorder %s222, %s224
      %p228 = scmp.eq.s32.totalorder %s20, 0
      %p229 = por %p227, %p228
      %p230 = scmp.ne.s32.totalorder %s222, %s224
      %p231 = scmp.eq.s32.totalorder %s25, 1
      %p232 = por %p230, %p231
      %p233 = scmp.ne.s32.totalorder %s224, %s225
      %p234 = scmp.eq.s32.totalorder %s25, 0
      %p235 = por %p233, %p234
      %p236 = scmp.ne.s32.totalorder %s224, %s225
      %p237 = scmp.eq.s32.totalorder %s26, 1
      %p238 = por %p236, %p237
      %p240 = scmp.ne.s32.totalorder %s225, %s239
      %p241 = scmp.eq.s32.totalorder %s26, 0
      %p242 = por %p240, %p241
      %s244 = sadd.s32 %s243, 1
      %p247 = scmp.eq.s32.totalorder %s20, 1
      %p248 = scmp.ne.s32.totalorder %s243, %s245
      %p249 = scmp.eq.s32.totalorder %s20, 0
      %p250 = por %p248, %p249
      %p251 = scmp.ne.s32.totalorder %s243, %s245
      %p252 = scmp.eq.s32.totalorder %s25, 1
      %p253 = por %p251, %p252
      %p254 = scmp.ne.s32.totalorder %s245, %s246
      %p255 = scmp.eq.s32.totalorder %s25, 0
      %p256 = por %p254, %p255
      %p257 = scmp.ne.s32.totalorder %s245, %s246
      %p258 = scmp.eq.s32.totalorder %s26, 1
      %p259 = por %p257, %p258
      %p261 = scmp.ne.s32.totalorder %s246, %s260
      %p262 = scmp.eq.s32.totalorder %s26, 0
      %p263 = por %p261, %p262
      %s264 = ssub.s32 %s20, %s27
      %p265 = scmp.eq.s32.totalorder %s264, 0
      %s267 = sadd.s32 %s266, 1
      %s268 = scalar_select %p265, %s266, %s267
      %p271 = pneg %p265
      %p272 = scmp.eq.s32.totalorder %s20, 1
      %p273 = por %p271, %p272
      %p274 = scmp.ne.s32.totalorder %s266, %s269
      %p275 = scmp.eq.s32.totalorder %s20, 0
      %p276 = por %p274, %p275
      %p277 = scmp.ne.s32.totalorder %s266, %s269
      %p278 = scmp.eq.s32.totalorder %s25, 1
      %p279 = por %p277, %p278
      %p280 = scmp.ne.s32.totalorder %s269, %s270
      %p281 = scmp.eq.s32.totalorder %s25, 0
      %p282 = por %p280, %p281
      %p283 = scmp.ne.s32.totalorder %s269, %s270
      %p284 = scmp.eq.s32.totalorder %s26, 1
      %p285 = por %p283, %p284
      %p287 = scmp.ne.s32.totalorder %s270, %s286
      %p288 = scmp.eq.s32.totalorder %s26, 0
      %p289 = por %p287, %p288
      %p290 = scmp.le.s32.totalorder 1, %s20
      %p291 = scmp.lt.s32.totalorder %s20, 3
      %p292 = pnand %p290, %p291
      %p293 = pneg %p292
      // Predicated region
      $region9: #{parallel_mamba_pallas.1} parent=5 // pred_check
        _
      $region10: #{parallel_mamba_pallas.1} parent=5 // pred_check_branch
        %295 = sbr.rel (%p292) target = $region12
      $region11: #{parallel_mamba_pallas.1} parent=5 // pred_region
        %s296 = ssub.s32 %s20, 1
        // Predicated region
        $region13: #{parallel_mamba_pallas.1} parent=11 // pred_check
          %p297 = pneg %p67
        $region14: #{parallel_mamba_pallas.1} parent=11 // pred_check_branch
          %299 = sbr.rel (%p297) target = $region16
        $region15: #{parallel_mamba_pallas.1} parent=11 // pred_region
          _
        $region16: #{parallel_mamba_pallas.1} parent=11 // pred_fallthru
          _
        // Predicated region
        $region17: #{parallel_mamba_pallas.1} parent=11 // pred_check
          %p300 = pneg %p88
        $region18: #{parallel_mamba_pallas.1} parent=11 // pred_check_branch
          %302 = sbr.rel (%p300) target = $region20
        $region19: #{parallel_mamba_pallas.1} parent=11 // pred_region
          _
        $region20: #{parallel_mamba_pallas.1} parent=11 // pred_fallthru
          _
        // Predicated region
        $region21: #{parallel_mamba_pallas.1} parent=11 // pred_check
          %p303 = pneg %p109
        $region22: #{parallel_mamba_pallas.1} parent=11 // pred_check_branch
          %305 = sbr.rel (%p303) target = $region24
        $region23: #{parallel_mamba_pallas.1} parent=11 // pred_region
          _
        $region24: #{parallel_mamba_pallas.1} parent=11 // pred_fallthru
          _
        // Predicated region
        $region25: #{parallel_mamba_pallas.1} parent=11 // pred_check
          %p306 = pneg %p130
        $region26: #{parallel_mamba_pallas.1} parent=11 // pred_check_branch
          %308 = sbr.rel (%p306) target = $region28
        $region27: #{parallel_mamba_pallas.1} parent=11 // pred_region
          _
        $region28: #{parallel_mamba_pallas.1} parent=11 // pred_fallthru
          _
        // Predicated region
        $region29: #{parallel_mamba_pallas.1} parent=11 // pred_check
          %p309 = pneg %p151
        $region30: #{parallel_mamba_pallas.1} parent=11 // pred_check_branch
          %311 = sbr.rel (%p309) target = $region32
        $region31: #{parallel_mamba_pallas.1} parent=11 // pred_region
          _
        $region32: #{parallel_mamba_pallas.1} parent=11 // pred_fallthru
          _
        // Predicated region
        $region33: #{parallel_mamba_pallas.1} parent=11 // pred_check
          %p312 = pneg %p172
        $region34: #{parallel_mamba_pallas.1} parent=11 // pred_check_branch
          %314 = sbr.rel (%p312) target = $region36
        $region35: #{parallel_mamba_pallas.1} parent=11 // pred_region
          _
        $region36: #{parallel_mamba_pallas.1} parent=11 // pred_fallthru
          _
        // Predicated region
        $region37: #{parallel_mamba_pallas.1} parent=11 // pred_check
          %p315 = pneg %p193
        $region38: #{parallel_mamba_pallas.1} parent=11 // pred_check_branch
          %317 = sbr.rel (%p315) target = $region40
        $region39: #{parallel_mamba_pallas.1} parent=11 // pred_region
          _
        $region40: #{parallel_mamba_pallas.1} parent=11 // pred_fallthru
          _
        // Predicated region
        $region41: #{parallel_mamba_pallas.1} parent=11 // pred_check
          %p318 = pneg %p214
        $region42: #{parallel_mamba_pallas.1} parent=11 // pred_check_branch
          %320 = sbr.rel (%p318) target = $region44
        $region43: #{parallel_mamba_pallas.1} parent=11 // pred_region
          _
        $region44: #{parallel_mamba_pallas.1} parent=11 // pred_fallthru
          _
        // Predicated region
        $region45: #{parallel_mamba_pallas.1} parent=11 // pred_check
          %p321 = pneg %p235
        $region46: #{parallel_mamba_pallas.1} parent=11 // pred_check_branch
          %323 = sbr.rel (%p321) target = $region48
        $region47: #{parallel_mamba_pallas.1} parent=11 // pred_region
          _
        $region48: #{parallel_mamba_pallas.1} parent=11 // pred_fallthru
          _
        // Predicated region
        $region49: #{parallel_mamba_pallas.1} parent=11 // pred_check
          %p324 = pneg %p256
        $region50: #{parallel_mamba_pallas.1} parent=11 // pred_check_branch
          %326 = sbr.rel (%p324) target = $region52
        $region51: #{parallel_mamba_pallas.1} parent=11 // pred_region
          _
        $region52: #{parallel_mamba_pallas.1} parent=11 // pred_fallthru
          _
      $region12: #{parallel_mamba_pallas.1} parent=5 // pred_fallthru
        _
      %p327 = scmp.lt.s32.totalorder %s20, 2
      // Predicated region
      $region53: #{parallel_mamba_pallas.1} parent=5 // pred_check
        %p328 = pneg %p327
      $region54: #{parallel_mamba_pallas.1} parent=5 // pred_check_branch
        %330 = sbr.rel (%p328) target = $region56
      $region55: #{parallel_mamba_pallas.1} parent=5 // pred_region
        // Predicated region
        $region57: #{parallel_mamba_pallas.1} parent=55 // pred_check
          %p331 = pneg %p40
        $region58: #{parallel_mamba_pallas.1} parent=55 // pred_check_branch
          %333 = sbr.rel (%p331) target = $region60
        $region59: #{parallel_mamba_pallas.1} parent=55 // pred_region
          %p334 = scmp.lt.s32.totalorder %s20, 1
          %s335 = scalar_select %p334, %s20, 1
          %s336 = smul.addr %s335, 8
          %s337 = scalar_lea.vmem %s0, %s336
        $region60: #{parallel_mamba_pallas.1} parent=55 // pred_fallthru
          _
      $region56: #{parallel_mamba_pallas.1} parent=5 // pred_fallthru
        _
      %p338 = scmp.le.s32.totalorder 1, %s20
      %p339 = scmp.lt.s32.totalorder %s20, 3
      %p340 = pnand %p338, %p339
      %p341 = pneg %p340
      // Predicated region
      $region61: #{parallel_mamba_pallas.1} parent=5 // pred_check
        _
      $region62: #{parallel_mamba_pallas.1} parent=5 // pred_check_branch
        %343 = sbr.rel (%p340) target = $region64
      $region63: #{parallel_mamba_pallas.1} parent=5 // pred_region
        %s344 = ssub.s32 %s20, 1
        %p345 = scmp.lt.s32.totalorder %s25, 1
        %s346 = scalar_select %p345, %s25, 1
        %s347 = smul.addr %s346, 8
        %s348 = scalar_lea.vmem %s0, %s347
        %p349 = pneg %p46
        %p350 = pneg %p43
        %p351 = pneg %p67
        %p352 = pneg %p64
        %p353 = pneg %p88
        %p354 = pneg %p85
        %p355 = pneg %p109
        %p356 = pneg %p106
        %p357 = pneg %p130
        %p358 = pneg %p127
        %p359 = pneg %p151
        %p360 = pneg %p148
        %p361 = pneg %p172
        %p362 = pneg %p169
        %p363 = pneg %p193
        %p364 = pneg %p190
        %p365 = pneg %p214
        %p366 = pneg %p211
        %p367 = pneg %p235
        %p368 = pneg %p232
        %p369 = pneg %p256
        %p370 = pneg %p253
        %p371 = pneg %p282
        %p372 = pneg %p279
        %s373 = sand.u32 %s269, 1
        %s374 = scalar_lea.sflag [#allocation7], %s373
        %s375 = sand.u32 %s269, 1
        %s376 = smul.addr %s375, 8
        %s377 = scalar_lea.vmem [#allocation6], %s376
        %p378 = scmp.lt.s32.totalorder %s25, 1
        %s379 = scalar_select %p378, %s25, 1
        %s380 = smul.addr %s379, 8
        %s381 = scalar_lea.vmem %s0, %s380
        %v382 = vld [vmem:[%s381] sm:$0xff]
        %v383 = vld [vmem:[%s1] sm:$0xff]
        %v384 = vld [vmem:[%s1 + $0x8] sm:$0xff]
        %v385 = vld [vmem:[%s1 + $0x10] sm:$0xff]
        %v386 = vld [vmem:[%s1 + $0x18] sm:$0xff]
        %v387 = vld [vmem:[%s2] sm:$0x1]
        %v389 = vlaneseq
        %v390 = vshrl.u32 %v389, 7
        %v391 = vsub.s32 0, %v390
        %v392 = vrot.slane %v387, %v391
        %vm394 = vcmask 261120
        %v396 = vsel %vm394, %v382, 0
        %398 = vmatprep.subr.mxu0 0.0
        %399 = vmatpush1.msra.mxu0 %v383
        %400 = vmatprep.subr.mxu0 0.0
        %401 = vmatpush1.msra.mxu0 %v384
        %402 = vmatprep.subr.mxu0 0.0
        %403 = vmatpush1.msra.mxu0 %v385
        %404 = vmatprep.subr.mxu0 0.0
        %405 = vmatpush1.msra.mxu0 %v386
        %406 = vmatprep.subr.mxu0 0.0
        %407 = vmatpush1.msra.mxu0 0.0
        %408 = vmatprep.subr.mxu0 0.0
        %409 = vmatpush1.msra.mxu0 0.0
        %410 = vmatprep.subr.mxu0 0.0
        %411 = vmatpush1.msra.mxu0 0.0
        %412 = vmatprep.subr.mxu0 0.0
        %413 = vmatpush1.msra.mxu0 0.0
        %414 = vmatprep.subr.mxu0 0.0
        %415 = vmatpush1.msra.mxu0 0.0
        %416 = vmatprep.subr.mxu0 0.0
        %417 = vmatpush1.msra.mxu0 0.0
        %418 = vmatprep.subr.mxu0 0.0
        %419 = vmatpush1.msra.mxu0 0.0
        %420 = vmatprep.subr.mxu0 0.0
        %421 = vmatpush1.msra.mxu0 0.0
        %422 = vmatprep.subr.mxu0 0.0
        %423 = vmatpush1.msra.mxu0 0.0
        %424 = vmatprep.subr.mxu0 0.0
        %425 = vmatpush1.msra.mxu0 0.0
        %426 = vmatprep.subr.mxu0 0.0
        %427 = vmatpush1.msra.mxu0 0.0
        %428 = vmatprep.subr.mxu0 0.0
        %429 = vmatpush1.msra.mxu0 0.0
        %430 = vmatprep.subr.mxu0 0.0
        %431 = vmatpush1.msra.mxu0 0.0
        %432 = vmatprep.subr.mxu0 0.0
        %433 = vmatpush1.msra.mxu0 0.0
        %434 = vmatprep.subr.mxu0 0.0
        %435 = vmatpush1.msra.mxu0 0.0
        %436 = vmatprep.subr.mxu0 0.0
        %437 = vmatpush1.msra.mxu0 0.0
        %438 = vmatprep.subr.mxu0 0.0
        %439 = vmatpush1.msra.mxu0 0.0
        %440 = vmatprep.subr.mxu0 0.0
        %441 = vmatpush1.msra.mxu0 0.0
        %442 = vmatprep.subr.mxu0 0.0
        %443 = vmatpush1.msra.mxu0 0.0
        %444 = vmatprep.subr.mxu0 0.0
        %445 = vmatpush1.msra.mxu0 0.0
        %446 = vmatprep.subr.mxu0 0.0
        %447 = vmatpush1.msra.mxu0 0.0
        %448 = vmatprep.subr.mxu0 0.0
        %449 = vmatpush1.msra.mxu0 0.0
        %450 = vmatprep.subr.mxu0 0.0
        %451 = vmatpush1.msra.mxu0 0.0
        %452 = vmatprep.subr.mxu0 0.0
        %453 = vmatpush1.msra.mxu0 0.0
        %454 = vmatprep.subr.mxu0 0.0
        %455 = vmatpush1.msra.mxu0 0.0
        %456 = vmatprep.subr.mxu0 0.0
        %457 = vmatpush1.msra.mxu0 0.0
        %458 = vmatprep.subr.mxu0 0.0
        %459 = vmatpush1.msra.mxu0 0.0
        %460 = vmatprep.subr.mxu0 0.0
        %461 = vmatpush1.msra.mxu0 0.0
        %462 = vmatprep.mubr.f32.mxu0 0.0
        %463 = vmatmul.mubr.f32.gmra.mrb[0].mxu0 %v396
        %v464 = vpop.f32.mrb[0].mxu0
        %v465 = vadd.f32 %v392, %v464
        %v466 = vpop.f32.mrb[0].mxu0
        %467 = vdwg.mxu0
        %vm468 = vcmask 517120
        %469 = vst.msk [vmem:[#allocation2] sm:$0x3] %vm468, 0.0
        %vm470 = vcmask 523264
        %471 = vst.msk [vmem:[#allocation2 + $0x2] sm:$0xff] %vm470, %v465
        %v472 = vld [vmem:[#allocation2] sm:$0xff]
        %v473 = vld [vmem:[%s3] sm:$0x1]
        %v474 = vlaneseq
        %v475 = vshrl.u32 %v474, 7
        %v476 = vsub.s32 0, %v475
        %v477 = vrot.slane %v473, %v476
        %v478 = vmul.f32 %v472, %v477
        %v479 = vld [vmem:[#allocation2 + $0x1] sm:$0xff]
        %v480 = vld [vmem:[%s3 + $0x1] sm:$0x1]
        %v481 = vlaneseq
        %v482 = vshrl.u32 %v481, 7
        %v483 = vsub.s32 0, %v482
        %v484 = vrot.slane %v480, %v483
        %v485 = vmul.f32 %v479, %v484
        %v486 = vadd.f32 %v478, %v485
        %v487 = vld [vmem:[#allocation2 + $0x2] sm:$0xff]
        %v488 = vld [vmem:[%s3 + $0x2] sm:$0x1]
        %v489 = vlaneseq
        %v490 = vshrl.u32 %v489, 7
        %v491 = vsub.s32 0, %v490
        %v492 = vrot.slane %v488, %v491
        %v493 = vmul.f32 %v487, %v492
        %v494 = vadd.f32 %v486, %v493
        %v495 = vld [vmem:[%s4] sm:$0x1]
        %v497 = vlaneseq
        %v498 = vshrl.u32 %v497, 7
        %v499 = vsub.s32 0, %v498
        %v500 = vrot.slane %v495, %v499
        %v502 = vadd.f32 %v494, %v500
        %v503 = vsub.f32 0.0, %v502
        %v504 = vmul.f32 %v503, 1.442695
        %v505 = vpow.pop %v504
        %v506 = vadd.f32 %v505, 1.0
        %v507 = vrcp.pop %v506
        %v508 = vmul.f32 1.0, %v507
        %v509 = vmul.f32 %v502, %v508
        %v510 = vld [vmem:[%s5] sm:$0xff]
        %v511 = vld [vmem:[%s5 + $0x8] sm:$0xff]
        %v512 = vld [vmem:[%s5 + $0x10] sm:$0xff]
        %v513 = vld [vmem:[%s5 + $0x18] sm:$0xff]
        %v514 = vld [vmem:[%s5 + $0x20] sm:$0xff]
        %v515 = vld [vmem:[%s5 + $0x28] sm:$0xff]
        %v516 = vld [vmem:[%s5 + $0x30] sm:$0xff]
        %v517 = vld [vmem:[%s5 + $0x38] sm:$0xff]
        %v519 = vsel %vm470, %v509, 0
        %521 = vmatprep.subr.mxu0 0.0
        %522 = vmatpush1.msra.mxu0 %v510
        %523 = vmatprep.subr.mxu0 0.0
        %524 = vmatpush1.msra.mxu0 %v511
        %525 = vmatprep.subr.mxu0 0.0
        %526 = vmatpush1.msra.mxu0 %v512
        %527 = vmatprep.subr.mxu0 0.0
        %528 = vmatpush1.msra.mxu0 %v513
        %529 = vmatprep.subr.mxu0 0.0
        %530 = vmatpush1.msra.mxu0 %v514
        %531 = vmatprep.subr.mxu0 0.0
        %532 = vmatpush1.msra.mxu0 %v515
        %533 = vmatprep.subr.mxu0 0.0
        %534 = vmatpush1.msra.mxu0 %v516
        %535 = vmatprep.subr.mxu0 0.0
        %536 = vmatpush1.msra.mxu0 %v517
        %537 = vmatprep.subr.mxu0 0.0
        %538 = vmatpush1.msra.mxu0 0.0
        %539 = vmatprep.subr.mxu0 0.0
        %540 = vmatpush1.msra.mxu0 0.0
        %541 = vmatprep.subr.mxu0 0.0
        %542 = vmatpush1.msra.mxu0 0.0
        %543 = vmatprep.subr.mxu0 0.0
        %544 = vmatpush1.msra.mxu0 0.0
        %545 = vmatprep.subr.mxu0 0.0
        %546 = vmatpush1.msra.mxu0 0.0
        %547 = vmatprep.subr.mxu0 0.0
        %548 = vmatpush1.msra.mxu0 0.0
        %549 = vmatprep.subr.mxu0 0.0
        %550 = vmatpush1.msra.mxu0 0.0
        %551 = vmatprep.subr.mxu0 0.0
        %552 = vmatpush1.msra.mxu0 0.0
        %553 = vmatprep.subr.mxu0 0.0
        %554 = vmatpush1.msra.mxu0 0.0
        %555 = vmatprep.subr.mxu0 0.0
        %556 = vmatpush1.msra.mxu0 0.0
        %557 = vmatprep.subr.mxu0 0.0
        %558 = vmatpush1.msra.mxu0 0.0
        %559 = vmatprep.subr.mxu0 0.0
        %560 = vmatpush1.msra.mxu0 0.0
        %561 = vmatprep.subr.mxu0 0.0
        %562 = vmatpush1.msra.mxu0 0.0
        %563 = vmatprep.subr.mxu0 0.0
        %564 = vmatpush1.msra.mxu0 0.0
        %565 = vmatprep.subr.mxu0 0.0
        %566 = vmatpush1.msra.mxu0 0.0
        %567 = vmatprep.subr.mxu0 0.0
        %568 = vmatpush1.msra.mxu0 0.0
        %569 = vmatprep.subr.mxu0 0.0
        %570 = vmatpush1.msra.mxu0 0.0
        %571 = vmatprep.subr.mxu0 0.0
        %572 = vmatpush1.msra.mxu0 0.0
        %573 = vmatprep.subr.mxu0 0.0
        %574 = vmatpush1.msra.mxu0 0.0
        %575 = vmatprep.subr.mxu0 0.0
        %576 = vmatpush1.msra.mxu0 0.0
        %577 = vmatprep.subr.mxu0 0.0
        %578 = vmatpush1.msra.mxu0 0.0
        %579 = vmatprep.subr.mxu0 0.0
        %580 = vmatpush1.msra.mxu0 0.0
        %581 = vmatprep.subr.mxu0 0.0
        %582 = vmatpush1.msra.mxu0 0.0
        %583 = vmatprep.subr.mxu0 0.0
        %584 = vmatpush1.msra.mxu0 0.0
        %585 = vmatprep.mubr.f32.mxu0 0.0
        %586 = vmatmul.mubr.f32.gmra.mrb[0].mxu0 %v519
        %v587 = vpop.f32.mrb[0].mxu0
        %v588 = vadd.f32 0.0, %v587
        %v589 = vpop.f32.mrb[0].mxu0
        %590 = vdwg.mxu0
        %v591 = vld [vmem:[%s6] sm:$0xff]
        %v592 = vld [vmem:[%s7] sm:$0x1]
        %v594 = vlaneseq
        %v595 = vshrl.u32 %v594, 7
        %v596 = vsub.s32 0, %v595
        %v597 = vrot.slane %v592, %v596
        %vm599 = vcmask 64512
        %v601 = vsel %vm599, %v588, 0
        %603 = vmatprep.subr.mxu0 0.0
        %604 = vmatpush1.msra.mxu0 %v591
        %605 = vmatprep.subr.mxu0 0.0
        %606 = vmatpush1.msra.mxu0 0.0
        %607 = vmatprep.subr.mxu0 0.0
        %608 = vmatpush1.msra.mxu0 0.0
        %609 = vmatprep.subr.mxu0 0.0
        %610 = vmatpush1.msra.mxu0 0.0
        %611 = vmatprep.subr.mxu0 0.0
        %612 = vmatpush1.msra.mxu0 0.0
        %613 = vmatprep.subr.mxu0 0.0
        %614 = vmatpush1.msra.mxu0 0.0
        %615 = vmatprep.subr.mxu0 0.0
        %616 = vmatpush1.msra.mxu0 0.0
        %617 = vmatprep.subr.mxu0 0.0
        %618 = vmatpush1.msra.mxu0 0.0
        %619 = vmatprep.subr.mxu0 0.0
        %620 = vmatpush1.msra.mxu0 0.0
        %621 = vmatprep.subr.mxu0 0.0
        %622 = vmatpush1.msra.mxu0 0.0
        %623 = vmatprep.subr.mxu0 0.0
        %624 = vmatpush1.msra.mxu0 0.0
        %625 = vmatprep.subr.mxu0 0.0
        %626 = vmatpush1.msra.mxu0 0.0
        %627 = vmatprep.subr.mxu0 0.0
        %628 = vmatpush1.msra.mxu0 0.0
        %629 = vmatprep.subr.mxu0 0.0
        %630 = vmatpush1.msra.mxu0 0.0
        %631 = vmatprep.subr.mxu0 0.0
        %632 = vmatpush1.msra.mxu0 0.0
        %633 = vmatprep.subr.mxu0 0.0
        %634 = vmatpush1.msra.mxu0 0.0
        %635 = vmatprep.subr.mxu0 0.0
        %636 = vmatpush1.msra.mxu0 0.0
        %637 = vmatprep.subr.mxu0 0.0
        %638 = vmatpush1.msra.mxu0 0.0
        %639 = vmatprep.subr.mxu0 0.0
        %640 = vmatpush1.msra.mxu0 0.0
        %641 = vmatprep.subr.mxu0 0.0
        %642 = vmatpush1.msra.mxu0 0.0
        %643 = vmatprep.subr.mxu0 0.0
        %644 = vmatpush1.msra.mxu0 0.0
        %645 = vmatprep.subr.mxu0 0.0
        %646 = vmatpush1.msra.mxu0 0.0
        %647 = vmatprep.subr.mxu0 0.0
        %648 = vmatpush1.msra.mxu0 0.0
        %649 = vmatprep.subr.mxu0 0.0
        %650 = vmatpush1.msra.mxu0 0.0
        %651 = vmatprep.subr.mxu0 0.0
        %652 = vmatpush1.msra.mxu0 0.0
        %653 = vmatprep.subr.mxu0 0.0
        %654 = vmatpush1.msra.mxu0 0.0
        %655 = vmatprep.subr.mxu0 0.0
        %656 = vmatpush1.msra.mxu0 0.0
        %657 = vmatprep.subr.mxu0 0.0
        %658 = vmatpush1.msra.mxu0 0.0
        %659 = vmatprep.subr.mxu0 0.0
        %660 = vmatpush1.msra.mxu0 0.0
        %661 = vmatprep.subr.mxu0 0.0
        %662 = vmatpush1.msra.mxu0 0.0
        %663 = vmatprep.subr.mxu0 0.0
        %664 = vmatpush1.msra.mxu0 0.0
        %665 = vmatprep.subr.mxu0 0.0
        %666 = vmatpush1.msra.mxu0 0.0
        %667 = vmatprep.mubr.f32.mxu0 0.0
        %668 = vmatmul.mubr.f32.gmra.mrb[0].mxu0 %v601
        %v669 = vpop.f32.mrb[0].mxu0
        %v670 = vadd.f32 %v597, %v669
        %v671 = vpop.f32.mrb[0].mxu0
        %672 = vdwg.mxu0
        %vm673 = vcmp.gt.f32.partialorder %v670, 20.0
        %v674 = vmin.f32 %v670, 20.0
        %v675 = vmul.f32 %v674, 1.442695
        %v676 = vpow.pop %v675
        %v677 = vadd.f32 %v676, 1.0
        %v678 = vlog2.pop %v677
        %v679 = vmul.f32 %v678, 0.6931472
        %v680 = vmul.f32 -0.5, %v676
        %v681 = vadd.f32 %v680, 1.0
        %v682 = vmul.f32 %v681, %v676
        %v683 = vand.u32 2147483647, %v676
        %vm684 = vcmp.lt.f32.partialorder %v683, 0.0004427343
        %v685 = vsel %vm684, %v682, %v679
        %v686 = vsel %vm673, %v670, %v685
        %687 = vst.msk [vmem:[#allocation3] sm:$0xff] %vm470, %v686
        %v688 = vmul.f32 %v686, %v509
        %689 = vst.msk [vmem:[#allocation4] sm:$0xff] %vm470, %v688
        %v690 = vld [vmem:[%s8] sm:$0xff]
        %v691 = vld [vmem:[%s8 + $0x8] sm:$0xff]
        %v692 = vmul.f32 %v690, 1.442695
        %v693 = vpow.pop %v692
        %v694 = vmul.f32 %v691, 1.442695
        %v695 = vpow.pop %v694
        %v696 = vsub.f32 0.0, %v693
        %v697 = vsub.f32 0.0, %v695
        %698 = vrot.lane.b32.xlu0 %v588, 120
        %v699 = vpop.permute.xlu0 %698
        %701 = vxpose.xlu0.b32.start [1/16] %v699, 128
        %702 = vxpose.xlu0.b32.cont [2/16] 0.0, 128
        %703 = vxpose.xlu0.b32.cont [3/16] 0.0, 128
        %704 = vxpose.xlu0.b32.cont [4/16] 0.0, 128
        %705 = vxpose.xlu0.b32.cont [5/16] 0.0, 128
        %706 = vxpose.xlu0.b32.cont [6/16] 0.0, 128
        %707 = vxpose.xlu0.b32.cont [7/16] 0.0, 128
        %708 = vxpose.xlu0.b32.cont [8/16] 0.0, 128
        %709 = vxpose.xlu0.b32.cont [9/16] 0.0, 128
        %710 = vxpose.xlu0.b32.cont [10/16] 0.0, 128
        %711 = vxpose.xlu0.b32.cont [11/16] 0.0, 128
        %712 = vxpose.xlu0.b32.cont [12/16] 0.0, 128
        %713 = vxpose.xlu0.b32.cont [13/16] 0.0, 128
        %714 = vxpose.xlu0.b32.cont [14/16] 0.0, 128
        %715 = vxpose.xlu0.b32.cont [15/16] 0.0, 128
        %716 = vxpose.xlu0.b32.end [16/16] 0.0, 128
        %v717 = vpop.trf.xlu0
        %v718 = vpop.trf.xlu0
        %v719 = vpop.trf.xlu0
        %v720 = vpop.trf.xlu0
        %v721 = vpop.trf.xlu0
        %v722 = vpop.trf.xlu0
        %v723 = vpop.trf.xlu0
        %v724 = vpop.trf.xlu0
        %v725 = vpop.trf.xlu0
        %v726 = vpop.trf.xlu0
        %v727 = vpop.trf.xlu0
        %v728 = vpop.trf.xlu0
        %v729 = vpop.trf.xlu0
        %v730 = vpop.trf.xlu0
        %v731 = vpop.trf.xlu0
        %v732 = vpop.trf.xlu0
        %733 = vrot.lane.b32.xlu0 %v588, 104
        %v734 = vpop.permute.xlu0 %733
        %736 = vxpose.xlu0.b32.start [1/16] %v734, 128
        %737 = vxpose.xlu0.b32.cont [2/16] 0.0, 128
        %738 = vxpose.xlu0.b32.cont [3/16] 0.0, 128
        %739 = vxpose.xlu0.b32.cont [4/16] 0.0, 128
        %740 = vxpose.xlu0.b32.cont [5/16] 0.0, 128
        %741 = vxpose.xlu0.b32.cont [6/16] 0.0, 128
        %742 = vxpose.xlu0.b32.cont [7/16] 0.0, 128
        %743 = vxpose.xlu0.b32.cont [8/16] 0.0, 128
        %744 = vxpose.xlu0.b32.cont [9/16] 0.0, 128
        %745 = vxpose.xlu0.b32.cont [10/16] 0.0, 128
        %746 = vxpose.xlu0.b32.cont [11/16] 0.0, 128
        %747 = vxpose.xlu0.b32.cont [12/16] 0.0, 128
        %748 = vxpose.xlu0.b32.cont [13/16] 0.0, 128
        %749 = vxpose.xlu0.b32.cont [14/16] 0.0, 128
        %750 = vxpose.xlu0.b32.cont [15/16] 0.0, 128
        %751 = vxpose.xlu0.b32.end [16/16] 0.0, 128
        %v752 = vpop.trf.xlu0
        %v753 = vpop.trf.xlu0
        %v754 = vpop.trf.xlu0
        %v755 = vpop.trf.xlu0
        %v756 = vpop.trf.xlu0
        %v757 = vpop.trf.xlu0
        %v758 = vpop.trf.xlu0
        %v759 = vpop.trf.xlu0
        %v760 = vpop.trf.xlu0
        %v761 = vpop.trf.xlu0
        %v762 = vpop.trf.xlu0
        %v763 = vpop.trf.xlu0
        %v764 = vpop.trf.xlu0
        %v765 = vpop.trf.xlu0
        %v766 = vpop.trf.xlu0
        %v767 = vpop.trf.xlu0
        %v768 = vlaneseq
        %v769 = vand.u32 %v768, 127
        %vm770 = vcmp.eq.s32.totalorder %v769, 0
        %v771 = vsel %vm770, 1, 0
        %v772 = vcvt.s32.f32 %v771
        %v773 = vmul.f32 %v717, %v772
        %v774 = vmul.f32 %v718, %v772
        %v775 = vsel %vm599, %v773, 0.0
        %776 = vadd.xlane.f32.xlu0 %v775
        %v777 = vpop.xlane.xlu0 %776
        %v778 = vsel %vm599, %v774, 0.0
        %779 = vadd.xlane.f32.xlu0 %v778
        %v780 = vpop.xlane.xlu0 %779
        %v781 = vmul.f32 %v752, %v772
        %v782 = vmul.f32 %v753, %v772
        %v783 = vsel %vm599, %v781, 0.0
        %784 = vadd.xlane.f32.xlu0 %v783
        %v785 = vpop.xlane.xlu0 %784
        %v786 = vsel %vm599, %v782, 0.0
        %787 = vadd.xlane.f32.xlu0 %v786
        %v788 = vpop.xlane.xlu0 %787
        %v789 = vld [vmem:[#allocation3] sm:$0x1]
        %v790 = vld [vmem:[#allocation4] sm:$0x1]
        %v791 = vlaneseq
        %v792 = vshrl.u32 %v791, 7
        %v793 = vsub.s32 0, %v792
        %v794 = vrot.slane %v789, %v793
        %v795 = vmul.f32 %v794, %v696
        %v796 = vmul.f32 %v794, %v697
        %v797 = vmul.f32 %v795, 1.442695
        %v798 = vpow.pop %v797
        %v799 = vmul.f32 %v796, 1.442695
        %v800 = vpow.pop %v799
        %v801 = vmul.f32 %v798, 0.0
        %v802 = vmul.f32 %v800, 0.0
        %v803 = vlaneseq
        %v804 = vshrl.u32 %v803, 7
        %v805 = vsub.s32 0, %v804
        %v806 = vrot.slane %v790, %v805
        %v807 = vmul.f32 %v777, %v806
        %v808 = vmul.f32 %v780, %v806
        %v809 = vadd.f32 %v801, %v807
        %v810 = vadd.f32 %v802, %v808
        %v811 = vmul.f32 %v809, %v785
        %v812 = vmul.f32 %v810, %v788
        %v813 = vsel %vm470, %v811, 0.0
        %v814 = vsel %vm470, %v812, 0.0
        %v815 = vadd.f32 %v813, %v814
        %v816 = vrot.slane %v815, 4
        %v817 = vadd.f32 %v815, %v816
        %v818 = vrot.slane %v817, 2
        %v819 = vadd.f32 %v817, %v818
        %v820 = vrot.slane %v819, 1
        %v821 = vadd.f32 %v819, %v820
        %vm822 = vcmask 516096
        %823 = vst.msk [vmem:[#allocation5] sm:$0x1] %vm822, %v821
        %vm824 = vcmp.eq.s32.totalorder %v769, 1
        %v825 = vsel %vm824, 1, 0
        %v826 = vcvt.s32.f32 %v825
        %v827 = vmul.f32 %v717, %v826
        %v828 = vmul.f32 %v718, %v826
        %v829 = vsel %vm599, %v827, 0.0
        %830 = vadd.xlane.f32.xlu0 %v829
        %v831 = vpop.xlane.xlu0 %830
        %v832 = vsel %vm599, %v828, 0.0
        %833 = vadd.xlane.f32.xlu0 %v832
        %v834 = vpop.xlane.xlu0 %833
        %v835 = vmul.f32 %v752, %v826
        %v836 = vmul.f32 %v753, %v826
        %v837 = vsel %vm599, %v835, 0.0
        %838 = vadd.xlane.f32.xlu0 %v837
        %v839 = vpop.xlane.xlu0 %838
        %v840 = vsel %vm599, %v836, 0.0
        %841 = vadd.xlane.f32.xlu0 %v840
        %v842 = vpop.xlane.xlu0 %841
        %v843 = vld [vmem:[#allocation3 + $0x1] sm:$0x1]
        %v844 = vld [vmem:[#allocation4 + $0x1] sm:$0x1]
        %v845 = vlaneseq
        %v846 = vshrl.u32 %v845, 7
        %v847 = vsub.s32 0, %v846
        %v848 = vrot.slane %v843, %v847
        %v849 = vmul.f32 %v848, %v696
        %v850 = vmul.f32 %v848, %v697
        %v851 = vmul.f32 %v849, 1.442695
        %v852 = vpow.pop %v851
        %v853 = vmul.f32 %v850, 1.442695
        %v854 = vpow.pop %v853
        %v855 = vmul.f32 %v852, %v809
        %v856 = vmul.f32 %v854, %v810
        %v857 = vlaneseq
        %v858 = vshrl.u32 %v857, 7
        %v859 = vsub.s32 0, %v858
        %v860 = vrot.slane %v844, %v859
        %v861 = vmul.f32 %v831, %v860
        %v862 = vmul.f32 %v834, %v860
        %v863 = vadd.f32 %v855, %v861
        %v864 = vadd.f32 %v856, %v862
        %v865 = vmul.f32 %v863, %v839
        %v866 = vmul.f32 %v864, %v842
        %v867 = vsel %vm470, %v865, 0.0
        %v868 = vsel %vm470, %v866, 0.0
        %v869 = vadd.f32 %v867, %v868
        %v870 = vrot.slane %v869, 4
        %v871 = vadd.f32 %v869, %v870
        %v872 = vrot.slane %v871, 2
        %v873 = vadd.f32 %v871, %v872
        %v874 = vrot.slane %v873, 1
        %v875 = vadd.f32 %v873, %v874
        %876 = vst.msk [vmem:[#allocation5 + $0x1] sm:$0x1] %vm822, %v875
        %vm877 = vcmp.eq.s32.totalorder %v769, 2
        %v878 = vsel %vm877, 1, 0
        %v879 = vcvt.s32.f32 %v878
        %v880 = vmul.f32 %v717, %v879
        %v881 = vmul.f32 %v718, %v879
        %v882 = vsel %vm599, %v880, 0.0
        %883 = vadd.xlane.f32.xlu0 %v882
        %v884 = vpop.xlane.xlu0 %883
        %v885 = vsel %vm599, %v881, 0.0
        %886 = vadd.xlane.f32.xlu0 %v885
        %v887 = vpop.xlane.xlu0 %886
        %v888 = vmul.f32 %v752, %v879
        %v889 = vmul.f32 %v753, %v879
        %v890 = vsel %vm599, %v888, 0.0
        %891 = vadd.xlane.f32.xlu0 %v890
        %v892 = vpop.xlane.xlu0 %891
        %v893 = vsel %vm599, %v889, 0.0
        %894 = vadd.xlane.f32.xlu0 %v893
        %v895 = vpop.xlane.xlu0 %894
        %v896 = vld [vmem:[#allocation3 + $0x2] sm:$0x1]
        %v897 = vld [vmem:[#allocation4 + $0x2] sm:$0x1]
        %v898 = vlaneseq
        %v899 = vshrl.u32 %v898, 7
        %v900 = vsub.s32 0, %v899
        %v901 = vrot.slane %v896, %v900
        %v902 = vmul.f32 %v901, %v696
        %v903 = vmul.f32 %v901, %v697
        %v904 = vmul.f32 %v902, 1.442695
        %v905 = vpow.pop %v904
        %v906 = vmul.f32 %v903, 1.442695
        %v907 = vpow.pop %v906
        %v908 = vmul.f32 %v905, %v863
        %v909 = vmul.f32 %v907, %v864
        %v910 = vlaneseq
        %v911 = vshrl.u32 %v910, 7
        %v912 = vsub.s32 0, %v911
        %v913 = vrot.slane %v897, %v912
        %v914 = vmul.f32 %v884, %v913
        %v915 = vmul.f32 %v887, %v913
        %v916 = vadd.f32 %v908, %v914
        %v917 = vadd.f32 %v909, %v915
        %v918 = vmul.f32 %v916, %v892
        %v919 = vmul.f32 %v917, %v895
        %v920 = vsel %vm470, %v918, 0.0
        %v921 = vsel %vm470, %v919, 0.0
        %v922 = vadd.f32 %v920, %v921
        %v923 = vrot.slane %v922, 4
        %v924 = vadd.f32 %v922, %v923
        %v925 = vrot.slane %v924, 2
        %v926 = vadd.f32 %v924, %v925
        %v927 = vrot.slane %v926, 1
        %v928 = vadd.f32 %v926, %v927
        %929 = vst.msk [vmem:[#allocation5 + $0x2] sm:$0x1] %vm822, %v928
        %vm930 = vcmp.eq.s32.totalorder %v769, 3
        %v931 = vsel %vm930, 1, 0
        %v932 = vcvt.s32.f32 %v931
        %v933 = vmul.f32 %v717, %v932
        %v934 = vmul.f32 %v718, %v932
        %v935 = vsel %vm599, %v933, 0.0
        %936 = vadd.xlane.f32.xlu0 %v935
        %v937 = vpop.xlane.xlu0 %936
        %v938 = vsel %vm599, %v934, 0.0
        %939 = vadd.xlane.f32.xlu0 %v938
        %v940 = vpop.xlane.xlu0 %939
        %v941 = vmul.f32 %v752, %v932
        %v942 = vmul.f32 %v753, %v932
        %v943 = vsel %vm599, %v941, 0.0
        %944 = vadd.xlane.f32.xlu0 %v943
        %v945 = vpop.xlane.xlu0 %944
        %v946 = vsel %vm599, %v942, 0.0
        %947 = vadd.xlane.f32.xlu0 %v946
        %v948 = vpop.xlane.xlu0 %947
        %v949 = vld [vmem:[#allocation3 + $0x3] sm:$0x1]
        %v950 = vld [vmem:[#allocation4 + $0x3] sm:$0x1]
        %v951 = vlaneseq
        %v952 = vshrl.u32 %v951, 7
        %v953 = vsub.s32 0, %v952
        %v954 = vrot.slane %v949, %v953
        %v955 = vmul.f32 %v954, %v696
        %v956 = vmul.f32 %v954, %v697
        %v957 = vmul.f32 %v955, 1.442695
        %v958 = vpow.pop %v957
        %v959 = vmul.f32 %v956, 1.442695
        %v960 = vpow.pop %v959
        %v961 = vmul.f32 %v958, %v916
        %v962 = vmul.f32 %v960, %v917
        %v963 = vlaneseq
        %v964 = vshrl.u32 %v963, 7
        %v965 = vsub.s32 0, %v964
        %v966 = vrot.slane %v950, %v965
        %v967 = vmul.f32 %v937, %v966
        %v968 = vmul.f32 %v940, %v966
        %v969 = vadd.f32 %v961, %v967
        %v970 = vadd.f32 %v962, %v968
        %v971 = vmul.f32 %v969, %v945
        %v972 = vmul.f32 %v970, %v948
        %v973 = vsel %vm470, %v971, 0.0
        %v974 = vsel %vm470, %v972, 0.0
        %v975 = vadd.f32 %v973, %v974
        %v976 = vrot.slane %v975, 4
        %v977 = vadd.f32 %v975, %v976
        %v978 = vrot.slane %v977, 2
        %v979 = vadd.f32 %v977, %v978
        %v980 = vrot.slane %v979, 1
        %v981 = vadd.f32 %v979, %v980
        %982 = vst.msk [vmem:[#allocation5 + $0x3] sm:$0x1] %vm822, %v981
        %vm983 = vcmp.eq.s32.totalorder %v769, 4
        %v984 = vsel %vm983, 1, 0
        %v985 = vcvt.s32.f32 %v984
        %v986 = vmul.f32 %v717, %v985
        %v987 = vmul.f32 %v718, %v985
        %v988 = vsel %vm599, %v986, 0.0
        %989 = vadd.xlane.f32.xlu0 %v988
        %v990 = vpop.xlane.xlu0 %989
        %v991 = vsel %vm599, %v987, 0.0
        %992 = vadd.xlane.f32.xlu0 %v991
        %v993 = vpop.xlane.xlu0 %992
        %v994 = vmul.f32 %v752, %v985
        %v995 = vmul.f32 %v753, %v985
        %v996 = vsel %vm599, %v994, 0.0
        %997 = vadd.xlane.f32.xlu0 %v996
        %v998 = vpop.xlane.xlu0 %997
        %v999 = vsel %vm599, %v995, 0.0
        %1000 = vadd.xlane.f32.xlu0 %v999
        %v1001 = vpop.xlane.xlu0 %1000
        %v1002 = vld [vmem:[#allocation3 + $0x4] sm:$0x1]
        %v1003 = vld [vmem:[#allocation4 + $0x4] sm:$0x1]
        %v1004 = vlaneseq
        %v1005 = vshrl.u32 %v1004, 7
        %v1006 = vsub.s32 0, %v1005
        %v1007 = vrot.slane %v1002, %v1006
        %v1008 = vmul.f32 %v1007, %v696
        %v1009 = vmul.f32 %v1007, %v697
        %v1010 = vmul.f32 %v1008, 1.442695
        %v1011 = vpow.pop %v1010
        %v1012 = vmul.f32 %v1009, 1.442695
        %v1013 = vpow.pop %v1012
        %v1014 = vmul.f32 %v1011, %v969
        %v1015 = vmul.f32 %v1013, %v970
        %v1016 = vlaneseq
        %v1017 = vshrl.u32 %v1016, 7
        %v1018 = vsub.s32 0, %v1017
        %v1019 = vrot.slane %v1003, %v1018
        %v1020 = vmul.f32 %v990, %v1019
        %v1021 = vmul.f32 %v993, %v1019
        %v1022 = vadd.f32 %v1014, %v1020
        %v1023 = vadd.f32 %v1015, %v1021
        %v1024 = vmul.f32 %v1022, %v998
        %v1025 = vmul.f32 %v1023, %v1001
        %v1026 = vsel %vm470, %v1024, 0.0
        %v1027 = vsel %vm470, %v1025, 0.0
        %v1028 = vadd.f32 %v1026, %v1027
        %v1029 = vrot.slane %v1028, 4
        %v1030 = vadd.f32 %v1028, %v1029
        %v1031 = vrot.slane %v1030, 2
        %v1032 = vadd.f32 %v1030, %v1031
        %v1033 = vrot.slane %v1032, 1
        %v1034 = vadd.f32 %v1032, %v1033
        %1035 = vst.msk [vmem:[#allocation5 + $0x4] sm:$0x1] %vm822, %v1034
        %vm1036 = vcmp.eq.s32.totalorder %v769, 5
        %v1037 = vsel %vm1036, 1, 0
        %v1038 = vcvt.s32.f32 %v1037
        %v1039 = vmul.f32 %v717, %v1038
        %v1040 = vmul.f32 %v718, %v1038
        %v1041 = vsel %vm599, %v1039, 0.0
        %1042 = vadd.xlane.f32.xlu0 %v1041
        %v1043 = vpop.xlane.xlu0 %1042
        %v1044 = vsel %vm599, %v1040, 0.0
        %1045 = vadd.xlane.f32.xlu0 %v1044
        %v1046 = vpop.xlane.xlu0 %1045
        %v1047 = vmul.f32 %v752, %v1038
        %v1048 = vmul.f32 %v753, %v1038
        %v1049 = vsel %vm599, %v1047, 0.0
        %1050 = vadd.xlane.f32.xlu0 %v1049
        %v1051 = vpop.xlane.xlu0 %1050
        %v1052 = vsel %vm599, %v1048, 0.0
        %1053 = vadd.xlane.f32.xlu0 %v1052
        %v1054 = vpop.xlane.xlu0 %1053
        %v1055 = vld [vmem:[#allocation3 + $0x5] sm:$0x1]
        %v1056 = vld [vmem:[#allocation4 + $0x5] sm:$0x1]
        %v1057 = vlaneseq
        %v1058 = vshrl.u32 %v1057, 7
        %v1059 = vsub.s32 0, %v1058
        %v1060 = vrot.slane %v1055, %v1059
        %v1061 = vmul.f32 %v1060, %v696
        %v1062 = vmul.f32 %v1060, %v697
        %v1063 = vmul.f32 %v1061, 1.442695
        %v1064 = vpow.pop %v1063
        %v1065 = vmul.f32 %v1062, 1.442695
        %v1066 = vpow.pop %v1065
        %v1067 = vmul.f32 %v1064, %v1022
        %v1068 = vmul.f32 %v1066, %v1023
        %v1069 = vlaneseq
        %v1070 = vshrl.u32 %v1069, 7
        %v1071 = vsub.s32 0, %v1070
        %v1072 = vrot.slane %v1056, %v1071
        %v1073 = vmul.f32 %v1043, %v1072
        %v1074 = vmul.f32 %v1046, %v1072
        %v1075 = vadd.f32 %v1067, %v1073
        %v1076 = vadd.f32 %v1068, %v1074
        %v1077 = vmul.f32 %v1075, %v1051
        %v1078 = vmul.f32 %v1076, %v1054
        %v1079 = vsel %vm470, %v1077, 0.0
        %v1080 = vsel %vm470, %v1078, 0.0
        %v1081 = vadd.f32 %v1079, %v1080
        %v1082 = vrot.slane %v1081, 4
        %v1083 = vadd.f32 %v1081, %v1082
        %v1084 = vrot.slane %v1083, 2
        %v1085 = vadd.f32 %v1083, %v1084
        %v1086 = vrot.slane %v1085, 1
        %v1087 = vadd.f32 %v1085, %v1086
        %1088 = vst.msk [vmem:[#allocation5 + $0x5] sm:$0x1] %vm822, %v1087
        %vm1089 = vcmp.eq.s32.totalorder %v769, 6
        %v1090 = vsel %vm1089, 1, 0
        %v1091 = vcvt.s32.f32 %v1090
        %v1092 = vmul.f32 %v717, %v1091
        %v1093 = vmul.f32 %v718, %v1091
        %v1094 = vsel %vm599, %v1092, 0.0
        %1095 = vadd.xlane.f32.xlu0 %v1094
        %v1096 = vpop.xlane.xlu0 %1095
        %v1097 = vsel %vm599, %v1093, 0.0
        %1098 = vadd.xlane.f32.xlu0 %v1097
        %v1099 = vpop.xlane.xlu0 %1098
        %v1100 = vmul.f32 %v752, %v1091
        %v1101 = vmul.f32 %v753, %v1091
        %v1102 = vsel %vm599, %v1100, 0.0
        %1103 = vadd.xlane.f32.xlu0 %v1102
        %v1104 = vpop.xlane.xlu0 %1103
        %v1105 = vsel %vm599, %v1101, 0.0
        %1106 = vadd.xlane.f32.xlu0 %v1105
        %v1107 = vpop.xlane.xlu0 %1106
        %v1108 = vld [vmem:[#allocation3 + $0x6] sm:$0x1]
        %v1109 = vld [vmem:[#allocation4 + $0x6] sm:$0x1]
        %v1110 = vlaneseq
        %v1111 = vshrl.u32 %v1110, 7
        %v1112 = vsub.s32 0, %v1111
        %v1113 = vrot.slane %v1108, %v1112
        %v1114 = vmul.f32 %v1113, %v696
        %v1115 = vmul.f32 %v1113, %v697
        %v1116 = vmul.f32 %v1114, 1.442695
        %v1117 = vpow.pop %v1116
        %v1118 = vmul.f32 %v1115, 1.442695
        %v1119 = vpow.pop %v1118
        %v1120 = vmul.f32 %v1117, %v1075
        %v1121 = vmul.f32 %v1119, %v1076
        %v1122 = vlaneseq
        %v1123 = vshrl.u32 %v1122, 7
        %v1124 = vsub.s32 0, %v1123
        %v1125 = vrot.slane %v1109, %v1124
        %v1126 = vmul.f32 %v1096, %v1125
        %v1127 = vmul.f32 %v1099, %v1125
        %v1128 = vadd.f32 %v1120, %v1126
        %v1129 = vadd.f32 %v1121, %v1127
        %v1130 = vmul.f32 %v1128, %v1104
        %v1131 = vmul.f32 %v1129, %v1107
        %v1132 = vsel %vm470, %v1130, 0.0
        %v1133 = vsel %vm470, %v1131, 0.0
        %v1134 = vadd.f32 %v1132, %v1133
        %v1135 = vrot.slane %v1134, 4
        %v1136 = vadd.f32 %v1134, %v1135
        %v1137 = vrot.slane %v1136, 2
        %v1138 = vadd.f32 %v1136, %v1137
        %v1139 = vrot.slane %v1138, 1
        %v1140 = vadd.f32 %v1138, %v1139
        %1141 = vst.msk [vmem:[#allocation5 + $0x6] sm:$0x1] %vm822, %v1140
        %vm1142 = vcmp.eq.s32.totalorder %v769, 7
        %v1143 = vsel %vm1142, 1, 0
        %v1144 = vcvt.s32.f32 %v1143
        %v1145 = vmul.f32 %v717, %v1144
        %v1146 = vmul.f32 %v718, %v1144
        %v1147 = vsel %vm599, %v1145, 0.0
        %1148 = vadd.xlane.f32.xlu0 %v1147
        %v1149 = vpop.xlane.xlu0 %1148
        %v1150 = vsel %vm599, %v1146, 0.0
        %1151 = vadd.xlane.f32.xlu0 %v1150
        %v1152 = vpop.xlane.xlu0 %1151
        %v1153 = vmul.f32 %v752, %v1144
        %v1154 = vmul.f32 %v753, %v1144
        %v1155 = vsel %vm599, %v1153, 0.0
        %1156 = vadd.xlane.f32.xlu0 %v1155
        %v1157 = vpop.xlane.xlu0 %1156
        %v1158 = vsel %vm599, %v1154, 0.0
        %1159 = vadd.xlane.f32.xlu0 %v1158
        %v1160 = vpop.xlane.xlu0 %1159
        %v1161 = vld [vmem:[#allocation3 + $0x7] sm:$0x1]
        %v1162 = vld [vmem:[#allocation4 + $0x7] sm:$0x1]
        %v1163 = vlaneseq
        %v1164 = vshrl.u32 %v1163, 7
        %v1165 = vsub.s32 0, %v1164
        %v1166 = vrot.slane %v1161, %v1165
        %v1167 = vmul.f32 %v1166, %v696
        %v1168 = vmul.f32 %v1166, %v697
        %v1169 = vmul.f32 %v1167, 1.442695
        %v1170 = vpow.pop %v1169
        %v1171 = vmul.f32 %v1168, 1.442695
        %v1172 = vpow.pop %v1171
        %v1173 = vmul.f32 %v1170, %v1128
        %v1174 = vmul.f32 %v1172, %v1129
        %v1175 = vlaneseq
        %v1176 = vshrl.u32 %v1175, 7
        %v1177 = vsub.s32 0, %v1176
        %v1178 = vrot.slane %v1162, %v1177
        %v1179 = vmul.f32 %v1149, %v1178
        %v1180 = vmul.f32 %v1152, %v1178
        %v1181 = vadd.f32 %v1173, %v1179
        %v1182 = vadd.f32 %v1174, %v1180
        %v1183 = vmul.f32 %v1181, %v1157
        %v1184 = vmul.f32 %v1182, %v1160
        %v1185 = vsel %vm470, %v1183, 0.0
        %v1186 = vsel %vm470, %v1184, 0.0
        %v1187 = vadd.f32 %v1185, %v1186
        %v1188 = vrot.slane %v1187, 4
        %v1189 = vadd.f32 %v1187, %v1188
        %v1190 = vrot.slane %v1189, 2
        %v1191 = vadd.f32 %v1189, %v1190
        %v1192 = vrot.slane %v1191, 1
        %v1193 = vadd.f32 %v1191, %v1192
        %1194 = vst.msk [vmem:[#allocation5 + $0x7] sm:$0x1] %vm822, %v1193
        %v1195 = vld [vmem:[#allocation5] sm:$0xff]
        %v1196 = vsub.f32 0.0, %v465
        %v1197 = vmul.f32 %v1196, 1.442695
        %v1198 = vpow.pop %v1197
        %v1199 = vadd.f32 %v1198, 1.0
        %v1200 = vrcp.pop %v1199
        %v1201 = vmul.f32 1.0, %v1200
        %v1202 = vmul.f32 %v465, %v1201
        %1204 = vrot.lane.b32.xlu0 %v1202, 64
        %v1205 = vpop.permute.xlu0 %1204
        %v1207 = vmul.f32 %v1195, %v1205
        %v1208 = vld [vmem:[%s9] sm:$0xff]
        %v1209 = vld [vmem:[%s9 + $0x8] sm:$0xff]
        %v1210 = vld [vmem:[%s9 + $0x10] sm:$0xff]
        %v1211 = vld [vmem:[%s9 + $0x18] sm:$0xff]
        %v1212 = vld [vmem:[%s9 + $0x20] sm:$0xff]
        %v1213 = vld [vmem:[%s9 + $0x28] sm:$0xff]
        %v1214 = vld [vmem:[%s9 + $0x30] sm:$0xff]
        %v1215 = vld [vmem:[%s9 + $0x38] sm:$0xff]
        %v1216 = vld [vmem:[%s10] sm:$0x1]
        %v1218 = vlaneseq
        %v1219 = vshrl.u32 %v1218, 7
        %v1220 = vsub.s32 0, %v1219
        %v1221 = vrot.slane %v1216, %v1220
        %v1224 = vsel %vm470, %v1207, 0
        %1226 = vmatprep.subr.mxu0 0.0
        %1227 = vmatpush1.msra.mxu0 %v1208
        %1228 = vmatprep.subr.mxu0 0.0
        %1229 = vmatpush1.msra.mxu0 %v1209
        %1230 = vmatprep.subr.mxu0 0.0
        %1231 = vmatpush1.msra.mxu0 %v1210
        %1232 = vmatprep.subr.mxu0 0.0
        %1233 = vmatpush1.msra.mxu0 %v1211
        %1234 = vmatprep.subr.mxu0 0.0
        %1235 = vmatpush1.msra.mxu0 %v1212
        %1236 = vmatprep.subr.mxu0 0.0
        %1237 = vmatpush1.msra.mxu0 %v1213
        %1238 = vmatprep.subr.mxu0 0.0
        %1239 = vmatpush1.msra.mxu0 %v1214
        %1240 = vmatprep.subr.mxu0 0.0
        %1241 = vmatpush1.msra.mxu0 %v1215
        %1242 = vmatprep.subr.mxu0 0.0
        %1243 = vmatpush1.msra.mxu0 0.0
        %1244 = vmatprep.subr.mxu0 0.0
        %1245 = vmatpush1.msra.mxu0 0.0
        %1246 = vmatprep.subr.mxu0 0.0
        %1247 = vmatpush1.msra.mxu0 0.0
        %1248 = vmatprep.subr.mxu0 0.0
        %1249 = vmatpush1.msra.mxu0 0.0
        %1250 = vmatprep.subr.mxu0 0.0
        %1251 = vmatpush1.msra.mxu0 0.0
        %1252 = vmatprep.subr.mxu0 0.0
        %1253 = vmatpush1.msra.mxu0 0.0
        %1254 = vmatprep.subr.mxu0 0.0
        %1255 = vmatpush1.msra.mxu0 0.0
        %1256 = vmatprep.subr.mxu0 0.0
        %1257 = vmatpush1.msra.mxu0 0.0
        %1258 = vmatprep.subr.mxu0 0.0
        %1259 = vmatpush1.msra.mxu0 0.0
        %1260 = vmatprep.subr.mxu0 0.0
        %1261 = vmatpush1.msra.mxu0 0.0
        %1262 = vmatprep.subr.mxu0 0.0
        %1263 = vmatpush1.msra.mxu0 0.0
        %1264 = vmatprep.subr.mxu0 0.0
        %1265 = vmatpush1.msra.mxu0 0.0
        %1266 = vmatprep.subr.mxu0 0.0
        %1267 = vmatpush1.msra.mxu0 0.0
        %1268 = vmatprep.subr.mxu0 0.0
        %1269 = vmatpush1.msra.mxu0 0.0
        %1270 = vmatprep.subr.mxu0 0.0
        %1271 = vmatpush1.msra.mxu0 0.0
        %1272 = vmatprep.subr.mxu0 0.0
        %1273 = vmatpush1.msra.mxu0 0.0
        %1274 = vmatprep.subr.mxu0 0.0
        %1275 = vmatpush1.msra.mxu0 0.0
        %1276 = vmatprep.subr.mxu0 0.0
        %1277 = vmatpush1.msra.mxu0 0.0
        %1278 = vmatprep.subr.mxu0 0.0
        %1279 = vmatpush1.msra.mxu0 0.0
        %1280 = vmatprep.subr.mxu0 0.0
        %1281 = vmatpush1.msra.mxu0 0.0
        %1282 = vmatprep.subr.mxu0 0.0
        %1283 = vmatpush1.msra.mxu0 0.0
        %1284 = vmatprep.subr.mxu0 0.0
        %1285 = vmatpush1.msra.mxu0 0.0
        %1286 = vmatprep.subr.mxu0 0.0
        %1287 = vmatpush1.msra.mxu0 0.0
        %1288 = vmatprep.subr.mxu0 0.0
        %1289 = vmatpush1.msra.mxu0 0.0
        %1290 = vmatprep.mubr.f32.mxu0 0.0
        %1291 = vmatmul.mubr.f32.gmra.mrb[0].mxu0 %v1224
        %v1292 = vpop.f32.mrb[0].mxu0
        %v1293 = vadd.f32 %v1221, %v1292
        %v1294 = vpop.f32.mrb[0].mxu0
        %1295 = vdwg.mxu0
        %1296 = vst.msk [vmem:[%s377] sm:$0xff] %vm394, %v1293
        %s1297 = sand.u32 %s269, 1
        %s1298 = scalar_lea.sflag [#allocation7], %s1297
        %s1299 = sand.u32 %s269, 1
        %s1300 = smul.addr %s1299, 8
        %s1301 = scalar_lea.vmem [#allocation6], %s1300
        // Predicated region
        $region65: #{parallel_mamba_pallas.1} parent=63 // pred_check
          %p1302 = pneg %p279
        $region66: #{parallel_mamba_pallas.1} parent=63 // pred_check_branch
          %1304 = sbr.rel (%p1302) target = $region68
        $region67: #{parallel_mamba_pallas.1} parent=63 // pred_region
          %s1306 = ssub.s32 128, 128
          %1307 = vsyncadd %s1298, %s1306
          %s1308 = smul.addr %s25, 128
          %s1309 = scalar_lea.hbm %s11, %s1308
          %s1311 = sshll.u32 %s1301, 4
          %s1312 = int_to_ptr.vmem [resolvable:$true] %s1311
          %1314 = dma.vmem_to_hbm [thread:$0]  %s1312, 128, %s1309, %s1298
        $region68: #{parallel_mamba_pallas.1} parent=63 // pred_fallthru
          _
      $region64: #{parallel_mamba_pallas.1} parent=5 // pred_fallthru
        _
      %p1315 = scmp.le.s32.totalorder 2, %s20
      // Predicated region
      $region69: #{parallel_mamba_pallas.1} parent=5 // pred_check
        %p1316 = pneg %p1315
      $region70: #{parallel_mamba_pallas.1} parent=5 // pred_check_branch
        %1318 = sbr.rel (%p1316) target = $region72
      $region71: #{parallel_mamba_pallas.1} parent=5 // pred_region
        %s1319 = ssub.s32 %s20, 2
        // Predicated region
        $region73: #{parallel_mamba_pallas.1} parent=71 // pred_check
          %p1320 = pneg %p285
        $region74: #{parallel_mamba_pallas.1} parent=71 // pred_check_branch
          %1322 = sbr.rel (%p1320) target = $region76
        $region75: #{parallel_mamba_pallas.1} parent=71 // pred_region
          %s1323 = sand.u32 %s270, 1
          %s1324 = scalar_lea.sflag [#allocation7], %s1323
          %s1325 = sand.u32 %s270, 1
          %s1326 = smul.addr %s1325, 8
          %s1327 = scalar_lea.vmem [#allocation6], %s1326
          %1328 = dma.done %s1324, 128
        $region76: #{parallel_mamba_pallas.1} parent=71 // pred_fallthru
          _
      $region72: #{parallel_mamba_pallas.1} parent=5 // pred_fallthru
        _
    $region6: #{parallel_mamba_pallas.1} parent=1 // loop_footer
      %s24 = sadd.s32 1, %s20
    $region7: #{parallel_mamba_pallas.1} parent=1 // loop_footer_branch
      %19 = sbr.rel target = $region3
    $region8: #{parallel_mamba_pallas.1} parent=1 // loop_exit
      _
    %1329 = vsyncpa [#allocation7], 1
    %s1330 = scalar_lea.sflag [#allocation7], 1
    %1331 = vsyncpa %s1330, 1

</llo_original>
